<compile_context>
chip_gen: v7x
topology: tpu7x:2x2x1
jax: 0.10.0
libtpu: 0.0.40
codegen_flags: <defaults>
</compile_context>

<pallas_src>
import jax
import jax.numpy as jnp
from jax.experimental import pallas as pl
from jax.experimental.pallas import tpu as pltpu


def _lstm_specialist_kernel(x_ref, h0_ref, c0_ref, wih_ref, whh_ref, b_ref,
                            wout_ref, bout_ref,
                            out_ref, hn_ref, cn_ref,
                            gx_scr):
    """LSTM recurrence + deferred output projection + sigmoid for one sequence."""
    H = h0_ref.shape[1]
    T = x_ref.shape[0]
    mm_dtype = whh_ref.dtype                      # MXU input dtype (f32 or bf16)

    # --- hoisted input projection: one (T, I) @ (I, 4H) MXU matmul + fused bias -----
    gx_scr[...] = (jnp.dot(x_ref[...], wih_ref[...],
                           preferred_element_type=jnp.float32)
                   + b_ref[...])                  # (T, 4H) f32, g-columns pre-scaled x2

    # --- recurrence: h/c (and the h history) live in vregs, never in VMEM -----------
    h = h0_ref[...]                               # (1, H) f32
    c = c0_ref[...]                               # (1, H) f32
    hs = []

    # T is static (from x.shape) and small -> full unroll gives LLO cross-step overlap.
    # TODO(synk): for long sequences, switch to a capped-unroll fori_loop over blocks
    #             with a VMEM h-history (and a T-chunked grid, see wrapper TODO).
    for t in range(T):
        # only h @ W_hh remains on the serial chain.
        # TODO(synk): verify in the Mosaic dump that the W_hh MXU RHS push is hoisted
        #             out of the unrolled steps (else drive matmul_push_rhs explicitly).
        gates = gx_scr[pl.ds(t, 1), :] + jnp.dot(
            h.astype(mm_dtype), whh_ref[...],
            preferred_element_type=jnp.float32)                   # (1, 4H)
        act = jax.nn.sigmoid(gates)               # ONE full-width EUP pass for i/f/g/o
        i_g = act[:, 0 * H:1 * H]
        f_g = act[:, 1 * H:2 * H]
        g_g = 2.0 * act[:, 2 * H:3 * H] - 1.0     # tanh(g) = 2*sigmoid(2g) - 1 (VPU fma)
        o_g = act[:, 3 * H:4 * H]
        c = f_g * c + i_g * g_g
        h = o_g * jnp.tanh(c)
        hs.append(h)                              # history stays in registers

    hist = jnp.concatenate(hs, axis=0)            # (T, H)

    # --- deferred output projection + sigmoid: one matmul, one lane-dense store -----
    out_ref[...] = jax.nn.sigmoid(
        jnp.dot(hist.astype(mm_dtype), wout_ref[...],
                preferred_element_type=jnp.float32)
        + bout_ref[...]).astype(out_ref.dtype)    # (T, O_pad), O_pad % 128 == 0

    hn_ref[...] = h
    cn_ref[...] = c


def lstm_specialist_pallas(x_2d, h0, c0, w_ih, w_hh, b_ih, b_hh, w_out, b_out,
                           matmul_dtype=jnp.float32):
    """x_2d: (T, I); h0/c0: (1, H); weights in PyTorch layout (4H,I)/(4H,H)/(4H,)/(O,H)/(O,)."""
    T, I = x_2d.shape
    H = h0.shape[1]
    O = w_out.shape[0]
    O_pad = ((O + 127) // 128) * 128              # lane-dense output slab

    # g-gate columns pre-scaled by 2 so the kernel uses a single full-width sigmoid and
    # recovers tanh via 2*sigmoid(2g)-1.  Scale-by-2 is exact, also under a bf16 cast.
    gate_scale = jnp.concatenate([jnp.ones((2 * H,), jnp.float32),
                                  jnp.full((H,), 2.0, jnp.float32),
                                  jnp.ones((H,), jnp.float32)])
    wih_t = (jnp.transpose(w_ih).astype(jnp.float32) * gate_scale).astype(matmul_dtype)
    whh_t = (jnp.transpose(w_hh).astype(jnp.float32) * gate_scale).astype(matmul_dtype)
    b = ((b_ih + b_hh).astype(jnp.float32) * gate_scale).reshape(1, 4 * H)

    wout_t = jnp.zeros((H, O_pad), matmul_dtype).at[:, :O].set(
        jnp.transpose(w_out).astype(matmul_dtype))
    bout = jnp.zeros((1, O_pad), jnp.float32).at[:, :O].set(b_out.astype(jnp.float32))

    itemsize = jnp.dtype(matmul_dtype).itemsize
    bytes_in = (T * I * itemsize                                  # x
                + 2 * H * 4                                       # h0, c0
                + (I * 4 * H + H * 4 * H + H * O_pad) * itemsize  # weights
                + 4 * H * 4 + O_pad * 4)                          # biases
    bytes_out = (T * O_pad + 2 * H) * 4
    live_bytes = bytes_in + bytes_out + T * 4 * H * 4             # + gx scratch
    vmem_limit = int(min(max(2 * live_bytes, 4 * 1024 * 1024), 100 * 1024 * 1024))

    cost = pl.CostEstimate(
        flops=2 * T * (I * 4 * H + H * 4 * H + H * O_pad),
        transcendentals=T * (5 * H + O_pad),
        bytes_accessed=bytes_in + bytes_out,
    )

    vmem = pl.BlockSpec(memory_space=pltpu.MemorySpace.VMEM)
    out_p, hn, cn = pl.pallas_call(
        _lstm_specialist_kernel,
        out_shape=(
            jax.ShapeDtypeStruct((T, O_pad), jnp.float32),
            jax.ShapeDtypeStruct((1, H), jnp.float32),
            jax.ShapeDtypeStruct((1, H), jnp.float32),
        ),
        in_specs=[vmem] * 8,
        out_specs=(vmem, vmem, vmem),
        scratch_shapes=[
            pltpu.VMEM((T, 4 * H), jnp.float32),   # hoisted input-gate pre-activations
        ],
        compiler_params=pltpu.CompilerParams(vmem_limit_bytes=vmem_limit),
        cost_estimate=cost,
        # TODO(synk): for long sequences / many sequences, add a T-chunked grid axis
        #             (stream x/gx/out per chunk, carry h/c across chunks) and a
        #             'parallel' batch axis so v7x's two TensorCores both get work.
    )(x_2d.astype(matmul_dtype), h0.astype(jnp.float32), c0.astype(jnp.float32),
      wih_t, whh_t, b, wout_t, bout)
    return out_p[:, :O], hn, cn


def lstm_specialist_forward(params, inp, hidden, tag, matmul_dtype=jnp.float32):
    """Mirrors LSTMSpecialist.forward.

    inp:    (T, 1, input_size)  (seq-first, batch=1, like torch nn.LSTM default)
    hidden: None or (h, c) each (num_layers=1, 1, hidden_size)
    tag:    scalar int composer id
    Returns (output (T, output_size), (h_n, c_n)).
    """
    num_layers = 1
    H = params["w_hh"].shape[1]
    I = params["w_ih"].shape[1]
    if hidden is None:
        # The original module views the embedding to (num_layers, 1, input_size);
        # that only type-checks when input_size == hidden_size -- enforce explicitly.
        assert I == H, "LSTMSpecialist embedding init requires input_size == hidden_size"
        h_t = params["h_embed"][tag].reshape(num_layers, 1, H)
        c_t = params["c_embed"][tag].reshape(num_layers, 1, H)
        hidden = (h_t, c_t)
    h0, c0 = hidden
    T = inp.shape[0]
    x_2d = inp.reshape(T, -1)
    out, hn, cn = lstm_specialist_pallas(
        x_2d, h0[0], c0[0],
        params["w_ih"], params["w_hh"], params["b_ih"], params["b_hh"],
        params["w_out"], params["b_out"], matmul_dtype=matmul_dtype)
    return out, (hn[None], cn[None])


def make_params(key, input_size, hidden_size, output_size, num_composers):
    ks = jax.random.split(key, 8)
    bound = 1.0 / jnp.sqrt(hidden_size)
    u = lambda k, shape, b: jax.random.uniform(k, shape, jnp.float32, -b, b)
    return {
        "w_ih": u(ks[0], (4 * hidden_size, input_size), bound),
        "w_hh": u(ks[1], (4 * hidden_size, hidden_size), bound),
        "b_ih": u(ks[2], (4 * hidden_size,), bound),
        "b_hh": u(ks[3], (4 * hidden_size,), bound),
        "w_out": u(ks[4], (output_size, hidden_size), 1.0 / jnp.sqrt(hidden_size)),
        "b_out": u(ks[5], (output_size,), 1.0 / jnp.sqrt(hidden_size)),
        "h_embed": jax.random.normal(ks[6], (num_composers, hidden_size), jnp.float32),
        "c_embed": jax.random.normal(ks[7], (num_composers, hidden_size), jnp.float32),
    }


def _reference_forward(params, inp, hidden, tag):
    """Plain-JAX reference of the same forward pass (for sanity checking)."""
    H = params["w_hh"].shape[1]
    if hidden is None:
        h = params["h_embed"][tag].reshape(1, H)
        c = params["c_embed"][tag].reshape(1, H)
    else:
        h, c = hidden[0][0], hidden[1][0]
    T = inp.shape[0]
    x = inp.reshape(T, -1)
    outs = []
    for t in range(T):
        g = x[t:t + 1] @ params["w_ih"].T + h @ params["w_hh"].T \
            + params["b_ih"] + params["b_hh"]
        i = jax.nn.sigmoid(g[:, 0 * H:1 * H])
        f = jax.nn.sigmoid(g[:, 1 * H:2 * H])
        gg = jnp.tanh(g[:, 2 * H:3 * H])
        o = jax.nn.sigmoid(g[:, 3 * H:4 * H])
        c = f * c + i * gg
        h = o * jnp.tanh(c)
        outs.append(jax.nn.sigmoid(h @ params["w_out"].T + params["b_out"]))
    return jnp.concatenate(outs, axis=0), (h[None], c[None])


if __name__ == "__main__":
    # Small, module-consistent shapes: seq=8, batch=1, input_size==hidden_size=32.
    INPUT_SIZE = 32
    HIDDEN_SIZE = 32   # must equal INPUT_SIZE (the module's .view requires it)
    OUTPUT_SIZE = 16
    NUM_COMPOSERS = 4
    SEQ_LEN = 8

    key = jax.random.PRNGKey(0)
    pkey, xkey = jax.random.split(key)
    params = make_params(pkey, INPUT_SIZE, HIDDEN_SIZE, OUTPUT_SIZE, NUM_COMPOSERS)

    inp = jax.random.normal(xkey, (SEQ_LEN, 1, INPUT_SIZE), jnp.float32)
    tag = jnp.int32(2)

    ref_out, (ref_h, ref_c) = _reference_forward(params, inp, None, tag)

    # --- f32 MXU path (default): tight check ---------------------------------------
    out, (h_n, c_n) = lstm_specialist_forward(params, inp, None, tag)
    out = jax.block_until_ready(out)
    h_n = jax.block_until_ready(h_n)
    c_n = jax.block_until_ready(c_n)

    assert out.shape == (SEQ_LEN, OUTPUT_SIZE)
    assert h_n.shape == (1, 1, HIDDEN_SIZE) and c_n.shape == (1, 1, HIDDEN_SIZE)
    # tolerance slightly loosened vs 1e-5 for the tanh(g)=2*sigmoid(2g)-1 rewrite
    assert jnp.allclose(out, ref_out, atol=1e-4)
    assert jnp.allclose(h_n, ref_h, atol=1e-4)
    assert jnp.allclose(c_n, ref_c, atol=1e-4)

    # --- bf16 MXU path (v5e-recommended): generous tolerance ------------------------
    out_bf, _ = lstm_specialist_forward(params, inp, None, tag,
                                        matmul_dtype=jnp.bfloat16)
    out_bf = jax.block_until_ready(out_bf)
    assert out_bf.shape == (SEQ_LEN, OUTPUT_SIZE)
    assert jnp.allclose(out_bf, ref_out, atol=5e-2)

    print("KERNEL_OK")
</pallas_src>

<mosaic_0001>
module attributes {stable_mosaic.version = 11 : i64} {
  func.func @_lstm_specialist_kernel(%arg0: memref<8x32xf32, #tpu.memory_space<vmem>>, %arg1: memref<1x32xf32, #tpu.memory_space<vmem>>, %arg2: memref<1x32xf32, #tpu.memory_space<vmem>>, %arg3: memref<32x128xf32, #tpu.memory_space<vmem>>, %arg4: memref<32x128xf32, #tpu.memory_space<vmem>>, %arg5: memref<1x128xf32, #tpu.memory_space<vmem>>, %arg6: memref<32x128xf32, #tpu.memory_space<vmem>>, %arg7: memref<1x128xf32, #tpu.memory_space<vmem>>, %arg8: memref<8x128xf32, #tpu.memory_space<vmem>>, %arg9: memref<1x32xf32, #tpu.memory_space<vmem>>, %arg10: memref<1x32xf32, #tpu.memory_space<vmem>>, %arg11: memref<8x128xf32, #tpu.memory_space<vmem>>) attributes {dimension_semantics = [], scalar_prefetch = 0 : i64, scratch_operands = 1 : i64, tpu.core_type = #tpu.core_type<tc>} {
    %c0 = arith.constant 0 : index
    %c0_0 = arith.constant 0 : index
    %0 = vector.load %arg0[%c0, %c0_0] : memref<8x32xf32, #tpu.memory_space<vmem>>, vector<8x32xf32>
    %c0_1 = arith.constant 0 : index
    %c0_2 = arith.constant 0 : index
    %1 = vector.load %arg3[%c0_1, %c0_2] : memref<32x128xf32, #tpu.memory_space<vmem>>, vector<32x128xf32>
    %cst = arith.constant dense<0.000000e+00> : vector<8x128xf32>
    %2 = tpu.matmul %0, %1, %cst {dimension_numbers = #tpu.dot_dimension_numbers<[1], [0], [0], [1], [0, 0, 1, 1], [], []>} : vector<8x32xf32>, vector<32x128xf32>, vector<8x128xf32> -> vector<8x128xf32>
    %c0_3 = arith.constant 0 : index
    %c0_4 = arith.constant 0 : index
    %3 = vector.load %arg5[%c0_3, %c0_4] : memref<1x128xf32, #tpu.memory_space<vmem>>, vector<1x128xf32>
    %4 = vector.broadcast %3 : vector<1x128xf32> to vector<8x128xf32>
    %5 = arith.addf %2, %4 : vector<8x128xf32>
    %c0_5 = arith.constant 0 : index
    %c0_6 = arith.constant 0 : index
    %6 = vector.load %arg11[%c0_5, %c0_6] : memref<8x128xf32, #tpu.memory_space<vmem>>, vector<8x128xf32>
    tpu.vector_store %arg11[%c0_5, %c0_6], %5 {strides = array<i32>} : memref<8x128xf32, #tpu.memory_space<vmem>>, vector<8x128xf32>,
    %c0_7 = arith.constant 0 : index
    %c0_8 = arith.constant 0 : index
    %7 = vector.load %arg1[%c0_7, %c0_8] : memref<1x32xf32, #tpu.memory_space<vmem>>, vector<1x32xf32>
    %c0_9 = arith.constant 0 : index
    %c0_10 = arith.constant 0 : index
    %8 = vector.load %arg2[%c0_9, %c0_10] : memref<1x32xf32, #tpu.memory_space<vmem>>, vector<1x32xf32>
    %c0_11 = arith.constant 0 : index
    %c0_12 = arith.constant 0 : index
    %9 = vector.load %arg11[%c0_11, %c0_12] : memref<8x128xf32, #tpu.memory_space<vmem>>, vector<1x128xf32>
    %c0_13 = arith.constant 0 : index
    %c0_14 = arith.constant 0 : index
    %10 = vector.load %arg4[%c0_13, %c0_14] : memref<32x128xf32, #tpu.memory_space<vmem>>, vector<32x128xf32>
    %cst_15 = arith.constant dense<0.000000e+00> : vector<1x128xf32>
    %11 = tpu.matmul %7, %10, %cst_15 {dimension_numbers = #tpu.dot_dimension_numbers<[1], [0], [0], [1], [0, 0, 1, 1], [], []>} : vector<1x32xf32>, vector<32x128xf32>, vector<1x128xf32> -> vector<1x128xf32>
    %12 = arith.addf %9, %11 : vector<1x128xf32>
    %13 = arith.negf %12 : vector<1x128xf32>
    %14 = math.exp %13 : vector<1x128xf32>
    %cst_16 = arith.constant 1.000000e+00 : f32
    %15 = vector.broadcast %cst_16 : f32 to vector<1x128xf32>
    %16 = arith.addf %15, %14 : vector<1x128xf32>
    %17 = arith.divf %15, %16 : vector<1x128xf32>
    %18 = vector.extract_strided_slice %17 {offsets = [0, 0], sizes = [1, 32], strides = [1, 1]} : vector<1x128xf32> to vector<1x32xf32>
    %19 = vector.extract_strided_slice %17 {offsets = [0, 32], sizes = [1, 32], strides = [1, 1]} : vector<1x128xf32> to vector<1x32xf32>
    %20 = vector.extract_strided_slice %17 {offsets = [0, 64], sizes = [1, 32], strides = [1, 1]} : vector<1x128xf32> to vector<1x32xf32>
    %cst_17 = arith.constant 2.000000e+00 : f32
    %21 = vector.broadcast %cst_17 : f32 to vector<1x32xf32>
    %22 = arith.mulf %21, %20 : vector<1x32xf32>
    %cst_18 = arith.constant 1.000000e+00 : f32
    %23 = vector.broadcast %cst_18 : f32 to vector<1x32xf32>
    %24 = arith.subf %22, %23 : vector<1x32xf32>
    %25 = vector.extract_strided_slice %17 {offsets = [0, 96], sizes = [1, 32], strides = [1, 1]} : vector<1x128xf32> to vector<1x32xf32>
    %26 = arith.mulf %19, %8 : vector<1x32xf32>
    %27 = arith.mulf %18, %24 : vector<1x32xf32>
    %28 = arith.addf %26, %27 : vector<1x32xf32>
    %29 = math.tanh %28 : vector<1x32xf32>
    %30 = arith.mulf %25, %29 : vector<1x32xf32>
    %c1 = arith.constant 1 : index
    %c0_19 = arith.constant 0 : index
    %31 = vector.load %arg11[%c1, %c0_19] : memref<8x128xf32, #tpu.memory_space<vmem>>, vector<1x128xf32>
    %c0_20 = arith.constant 0 : index
    %c0_21 = arith.constant 0 : index
    %32 = vector.load %arg4[%c0_20, %c0_21] : memref<32x128xf32, #tpu.memory_space<vmem>>, vector<32x128xf32>
    %cst_22 = arith.constant dense<0.000000e+00> : vector<1x128xf32>
    %33 = tpu.matmul %30, %32, %cst_22 {dimension_numbers = #tpu.dot_dimension_numbers<[1], [0], [0], [1], [0, 0, 1, 1], [], []>} : vector<1x32xf32>, vector<32x128xf32>, vector<1x128xf32> -> vector<1x128xf32>
    %34 = arith.addf %31, %33 : vector<1x128xf32>
    %35 = arith.negf %34 : vector<1x128xf32>
    %36 = math.exp %35 : vector<1x128xf32>
    %cst_23 = arith.constant 1.000000e+00 : f32
    %37 = vector.broadcast %cst_23 : f32 to vector<1x128xf32>
    %38 = arith.addf %37, %36 : vector<1x128xf32>
    %39 = arith.divf %37, %38 : vector<1x128xf32>
    %40 = vector.extract_strided_slice %39 {offsets = [0, 0], sizes = [1, 32], strides = [1, 1]} : vector<1x128xf32> to vector<1x32xf32>
    %41 = vector.extract_strided_slice %39 {offsets = [0, 32], sizes = [1, 32], strides = [1, 1]} : vector<1x128xf32> to vector<1x32xf32>
    %42 = vector.extract_strided_slice %39 {offsets = [0, 64], sizes = [1, 32], strides = [1, 1]} : vector<1x128xf32> to vector<1x32xf32>
    %cst_24 = arith.constant 2.000000e+00 : f32
    %43 = vector.broadcast %cst_24 : f32 to vector<1x32xf32>
    %44 = arith.mulf %43, %42 : vector<1x32xf32>
    %cst_25 = arith.constant 1.000000e+00 : f32
    %45 = vector.broadcast %cst_25 : f32 to vector<1x32xf32>
    %46 = arith.subf %44, %45 : vector<1x32xf32>
    %47 = vector.extract_strided_slice %39 {offsets = [0, 96], sizes = [1, 32], strides = [1, 1]} : vector<1x128xf32> to vector<1x32xf32>
    %48 = arith.mulf %41, %28 : vector<1x32xf32>
    %49 = arith.mulf %40, %46 : vector<1x32xf32>
    %50 = arith.addf %48, %49 : vector<1x32xf32>
    %51 = math.tanh %50 : vector<1x32xf32>
    %52 = arith.mulf %47, %51 : vector<1x32xf32>
    %c2 = arith.constant 2 : index
    %c0_26 = arith.constant 0 : index
    %53 = vector.load %arg11[%c2, %c0_26] : memref<8x128xf32, #tpu.memory_space<vmem>>, vector<1x128xf32>
    %c0_27 = arith.constant 0 : index
    %c0_28 = arith.constant 0 : index
    %54 = vector.load %arg4[%c0_27, %c0_28] : memref<32x128xf32, #tpu.memory_space<vmem>>, vector<32x128xf32>
    %cst_29 = arith.constant dense<0.000000e+00> : vector<1x128xf32>
    %55 = tpu.matmul %52, %54, %cst_29 {dimension_numbers = #tpu.dot_dimension_numbers<[1], [0], [0], [1], [0, 0, 1, 1], [], []>} : vector<1x32xf32>, vector<32x128xf32>, vector<1x128xf32> -> vector<1x128xf32>
    %56 = arith.addf %53, %55 : vector<1x128xf32>
    %57 = arith.negf %56 : vector<1x128xf32>
    %58 = math.exp %57 : vector<1x128xf32>
    %cst_30 = arith.constant 1.000000e+00 : f32
    %59 = vector.broadcast %cst_30 : f32 to vector<1x128xf32>
    %60 = arith.addf %59, %58 : vector<1x128xf32>
    %61 = arith.divf %59, %60 : vector<1x128xf32>
    %62 = vector.extract_strided_slice %61 {offsets = [0, 0], sizes = [1, 32], strides = [1, 1]} : vector<1x128xf32> to vector<1x32xf32>
    %63 = vector.extract_strided_slice %61 {offsets = [0, 32], sizes = [1, 32], strides = [1, 1]} : vector<1x128xf32> to vector<1x32xf32>
    %64 = vector.extract_strided_slice %61 {offsets = [0, 64], sizes = [1, 32], strides = [1, 1]} : vector<1x128xf32> to vector<1x32xf32>
    %cst_31 = arith.constant 2.000000e+00 : f32
    %65 = vector.broadcast %cst_31 : f32 to vector<1x32xf32>
    %66 = arith.mulf %65, %64 : vector<1x32xf32>
    %cst_32 = arith.constant 1.000000e+00 : f32
    %67 = vector.broadcast %cst_32 : f32 to vector<1x32xf32>
    %68 = arith.subf %66, %67 : vector<1x32xf32>
    %69 = vector.extract_strided_slice %61 {offsets = [0, 96], sizes = [1, 32], strides = [1, 1]} : vector<1x128xf32> to vector<1x32xf32>
    %70 = arith.mulf %63, %50 : vector<1x32xf32>
    %71 = arith.mulf %62, %68 : vector<1x32xf32>
    %72 = arith.addf %70, %71 : vector<1x32xf32>
    %73 = math.tanh %72 : vector<1x32xf32>
    %74 = arith.mulf %69, %73 : vector<1x32xf32>
    %c3 = arith.constant 3 : index
    %c0_33 = arith.constant 0 : index
    %75 = vector.load %arg11[%c3, %c0_33] : memref<8x128xf32, #tpu.memory_space<vmem>>, vector<1x128xf32>
    %c0_34 = arith.constant 0 : index
    %c0_35 = arith.constant 0 : index
    %76 = vector.load %arg4[%c0_34, %c0_35] : memref<32x128xf32, #tpu.memory_space<vmem>>, vector<32x128xf32>
    %cst_36 = arith.constant dense<0.000000e+00> : vector<1x128xf32>
    %77 = tpu.matmul %74, %76, %cst_36 {dimension_numbers = #tpu.dot_dimension_numbers<[1], [0], [0], [1], [0, 0, 1, 1], [], []>} : vector<1x32xf32>, vector<32x128xf32>, vector<1x128xf32> -> vector<1x128xf32>
    %78 = arith.addf %75, %77 : vector<1x128xf32>
    %79 = arith.negf %78 : vector<1x128xf32>
    %80 = math.exp %79 : vector<1x128xf32>
    %cst_37 = arith.constant 1.000000e+00 : f32
    %81 = vector.broadcast %cst_37 : f32 to vector<1x128xf32>
    %82 = arith.addf %81, %80 : vector<1x128xf32>
    %83 = arith.divf %81, %82 : vector<1x128xf32>
    %84 = vector.extract_strided_slice %83 {offsets = [0, 0], sizes = [1, 32], strides = [1, 1]} : vector<1x128xf32> to vector<1x32xf32>
    %85 = vector.extract_strided_slice %83 {offsets = [0, 32], sizes = [1, 32], strides = [1, 1]} : vector<1x128xf32> to vector<1x32xf32>
    %86 = vector.extract_strided_slice %83 {offsets = [0, 64], sizes = [1, 32], strides = [1, 1]} : vector<1x128xf32> to vector<1x32xf32>
    %cst_38 = arith.constant 2.000000e+00 : f32
    %87 = vector.broadcast %cst_38 : f32 to vector<1x32xf32>
    %88 = arith.mulf %87, %86 : vector<1x32xf32>
    %cst_39 = arith.constant 1.000000e+00 : f32
    %89 = vector.broadcast %cst_39 : f32 to vector<1x32xf32>
    %90 = arith.subf %88, %89 : vector<1x32xf32>
    %91 = vector.extract_strided_slice %83 {offsets = [0, 96], sizes = [1, 32], strides = [1, 1]} : vector<1x128xf32> to vector<1x32xf32>
    %92 = arith.mulf %85, %72 : vector<1x32xf32>
    %93 = arith.mulf %84, %90 : vector<1x32xf32>
    %94 = arith.addf %92, %93 : vector<1x32xf32>
    %95 = math.tanh %94 : vector<1x32xf32>
    %96 = arith.mulf %91, %95 : vector<1x32xf32>
    %c4 = arith.constant 4 : index
    %c0_40 = arith.constant 0 : index
    %97 = vector.load %arg11[%c4, %c0_40] : memref<8x128xf32, #tpu.memory_space<vmem>>, vector<1x128xf32>
    %c0_41 = arith.constant 0 : index
    %c0_42 = arith.constant 0 : index
    %98 = vector.load %arg4[%c0_41, %c0_42] : memref<32x128xf32, #tpu.memory_space<vmem>>, vector<32x128xf32>
    %cst_43 = arith.constant dense<0.000000e+00> : vector<1x128xf32>
    %99 = tpu.matmul %96, %98, %cst_43 {dimension_numbers = #tpu.dot_dimension_numbers<[1], [0], [0], [1], [0, 0, 1, 1], [], []>} : vector<1x32xf32>, vector<32x128xf32>, vector<1x128xf32> -> vector<1x128xf32>
    %100 = arith.addf %97, %99 : vector<1x128xf32>
    %101 = arith.negf %100 : vector<1x128xf32>
    %102 = math.exp %101 : vector<1x128xf32>
    %cst_44 = arith.constant 1.000000e+00 : f32
    %103 = vector.broadcast %cst_44 : f32 to vector<1x128xf32>
    %104 = arith.addf %103, %102 : vector<1x128xf32>
    %105 = arith.divf %103, %104 : vector<1x128xf32>
    %106 = vector.extract_strided_slice %105 {offsets = [0, 0], sizes = [1, 32], strides = [1, 1]} : vector<1x128xf32> to vector<1x32xf32>
    %107 = vector.extract_strided_slice %105 {offsets = [0, 32], sizes = [1, 32], strides = [1, 1]} : vector<1x128xf32> to vector<1x32xf32>
    %108 = vector.extract_strided_slice %105 {offsets = [0, 64], sizes = [1, 32], strides = [1, 1]} : vector<1x128xf32> to vector<1x32xf32>
    %cst_45 = arith.constant 2.000000e+00 : f32
    %109 = vector.broadcast %cst_45 : f32 to vector<1x32xf32>
    %110 = arith.mulf %109, %108 : vector<1x32xf32>
    %cst_46 = arith.constant 1.000000e+00 : f32
    %111 = vector.broadcast %cst_46 : f32 to vector<1x32xf32>
    %112 = arith.subf %110, %111 : vector<1x32xf32>
    %113 = vector.extract_strided_slice %105 {offsets = [0, 96], sizes = [1, 32], strides = [1, 1]} : vector<1x128xf32> to vector<1x32xf32>
    %114 = arith.mulf %107, %94 : vector<1x32xf32>
    %115 = arith.mulf %106, %112 : vector<1x32xf32>
    %116 = arith.addf %114, %115 : vector<1x32xf32>
    %117 = math.tanh %116 : vector<1x32xf32>
    %118 = arith.mulf %113, %117 : vector<1x32xf32>
    %c5 = arith.constant 5 : index
    %c0_47 = arith.constant 0 : index
    %119 = vector.load %arg11[%c5, %c0_47] : memref<8x128xf32, #tpu.memory_space<vmem>>, vector<1x128xf32>
    %c0_48 = arith.constant 0 : index
    %c0_49 = arith.constant 0 : index
    %120 = vector.load %arg4[%c0_48, %c0_49] : memref<32x128xf32, #tpu.memory_space<vmem>>, vector<32x128xf32>
    %cst_50 = arith.constant dense<0.000000e+00> : vector<1x128xf32>
    %121 = tpu.matmul %118, %120, %cst_50 {dimension_numbers = #tpu.dot_dimension_numbers<[1], [0], [0], [1], [0, 0, 1, 1], [], []>} : vector<1x32xf32>, vector<32x128xf32>, vector<1x128xf32> -> vector<1x128xf32>
    %122 = arith.addf %119, %121 : vector<1x128xf32>
    %123 = arith.negf %122 : vector<1x128xf32>
    %124 = math.exp %123 : vector<1x128xf32>
    %cst_51 = arith.constant 1.000000e+00 : f32
    %125 = vector.broadcast %cst_51 : f32 to vector<1x128xf32>
    %126 = arith.addf %125, %124 : vector<1x128xf32>
    %127 = arith.divf %125, %126 : vector<1x128xf32>
    %128 = vector.extract_strided_slice %127 {offsets = [0, 0], sizes = [1, 32], strides = [1, 1]} : vector<1x128xf32> to vector<1x32xf32>
    %129 = vector.extract_strided_slice %127 {offsets = [0, 32], sizes = [1, 32], strides = [1, 1]} : vector<1x128xf32> to vector<1x32xf32>
    %130 = vector.extract_strided_slice %127 {offsets = [0, 64], sizes = [1, 32], strides = [1, 1]} : vector<1x128xf32> to vector<1x32xf32>
    %cst_52 = arith.constant 2.000000e+00 : f32
    %131 = vector.broadcast %cst_52 : f32 to vector<1x32xf32>
    %132 = arith.mulf %131, %130 : vector<1x32xf32>
    %cst_53 = arith.constant 1.000000e+00 : f32
    %133 = vector.broadcast %cst_53 : f32 to vector<1x32xf32>
    %134 = arith.subf %132, %133 : vector<1x32xf32>
    %135 = vector.extract_strided_slice %127 {offsets = [0, 96], sizes = [1, 32], strides = [1, 1]} : vector<1x128xf32> to vector<1x32xf32>
    %136 = arith.mulf %129, %116 : vector<1x32xf32>
    %137 = arith.mulf %128, %134 : vector<1x32xf32>
    %138 = arith.addf %136, %137 : vector<1x32xf32>
    %139 = math.tanh %138 : vector<1x32xf32>
    %140 = arith.mulf %135, %139 : vector<1x32xf32>
    %c6 = arith.constant 6 : index
    %c0_54 = arith.constant 0 : index
    %141 = vector.load %arg11[%c6, %c0_54] : memref<8x128xf32, #tpu.memory_space<vmem>>, vector<1x128xf32>
    %c0_55 = arith.constant 0 : index
    %c0_56 = arith.constant 0 : index
    %142 = vector.load %arg4[%c0_55, %c0_56] : memref<32x128xf32, #tpu.memory_space<vmem>>, vector<32x128xf32>
    %cst_57 = arith.constant dense<0.000000e+00> : vector<1x128xf32>
    %143 = tpu.matmul %140, %142, %cst_57 {dimension_numbers = #tpu.dot_dimension_numbers<[1], [0], [0], [1], [0, 0, 1, 1], [], []>} : vector<1x32xf32>, vector<32x128xf32>, vector<1x128xf32> -> vector<1x128xf32>
    %144 = arith.addf %141, %143 : vector<1x128xf32>
    %145 = arith.negf %144 : vector<1x128xf32>
    %146 = math.exp %145 : vector<1x128xf32>
    %cst_58 = arith.constant 1.000000e+00 : f32
    %147 = vector.broadcast %cst_58 : f32 to vector<1x128xf32>
    %148 = arith.addf %147, %146 : vector<1x128xf32>
    %149 = arith.divf %147, %148 : vector<1x128xf32>
    %150 = vector.extract_strided_slice %149 {offsets = [0, 0], sizes = [1, 32], strides = [1, 1]} : vector<1x128xf32> to vector<1x32xf32>
    %151 = vector.extract_strided_slice %149 {offsets = [0, 32], sizes = [1, 32], strides = [1, 1]} : vector<1x128xf32> to vector<1x32xf32>
    %152 = vector.extract_strided_slice %149 {offsets = [0, 64], sizes = [1, 32], strides = [1, 1]} : vector<1x128xf32> to vector<1x32xf32>
    %cst_59 = arith.constant 2.000000e+00 : f32
    %153 = vector.broadcast %cst_59 : f32 to vector<1x32xf32>
    %154 = arith.mulf %153, %152 : vector<1x32xf32>
    %cst_60 = arith.constant 1.000000e+00 : f32
    %155 = vector.broadcast %cst_60 : f32 to vector<1x32xf32>
    %156 = arith.subf %154, %155 : vector<1x32xf32>
    %157 = vector.extract_strided_slice %149 {offsets = [0, 96], sizes = [1, 32], strides = [1, 1]} : vector<1x128xf32> to vector<1x32xf32>
    %158 = arith.mulf %151, %138 : vector<1x32xf32>
    %159 = arith.mulf %150, %156 : vector<1x32xf32>
    %160 = arith.addf %158, %159 : vector<1x32xf32>
    %161 = math.tanh %160 : vector<1x32xf32>
    %162 = arith.mulf %157, %161 : vector<1x32xf32>
    %c7 = arith.constant 7 : index
    %c0_61 = arith.constant 0 : index
    %163 = vector.load %arg11[%c7, %c0_61] : memref<8x128xf32, #tpu.memory_space<vmem>>, vector<1x128xf32>
    %c0_62 = arith.constant 0 : index
    %c0_63 = arith.constant 0 : index
    %164 = vector.load %arg4[%c0_62, %c0_63] : memref<32x128xf32, #tpu.memory_space<vmem>>, vector<32x128xf32>
    %cst_64 = arith.constant dense<0.000000e+00> : vector<1x128xf32>
    %165 = tpu.matmul %162, %164, %cst_64 {dimension_numbers = #tpu.dot_dimension_numbers<[1], [0], [0], [1], [0, 0, 1, 1], [], []>} : vector<1x32xf32>, vector<32x128xf32>, vector<1x128xf32> -> vector<1x128xf32>
    %166 = arith.addf %163, %165 : vector<1x128xf32>
    %167 = arith.negf %166 : vector<1x128xf32>
    %168 = math.exp %167 : vector<1x128xf32>
    %cst_65 = arith.constant 1.000000e+00 : f32
    %169 = vector.broadcast %cst_65 : f32 to vector<1x128xf32>
    %170 = arith.addf %169, %168 : vector<1x128xf32>
    %171 = arith.divf %169, %170 : vector<1x128xf32>
    %172 = vector.extract_strided_slice %171 {offsets = [0, 0], sizes = [1, 32], strides = [1, 1]} : vector<1x128xf32> to vector<1x32xf32>
    %173 = vector.extract_strided_slice %171 {offsets = [0, 32], sizes = [1, 32], strides = [1, 1]} : vector<1x128xf32> to vector<1x32xf32>
    %174 = vector.extract_strided_slice %171 {offsets = [0, 64], sizes = [1, 32], strides = [1, 1]} : vector<1x128xf32> to vector<1x32xf32>
    %cst_66 = arith.constant 2.000000e+00 : f32
    %175 = vector.broadcast %cst_66 : f32 to vector<1x32xf32>
    %176 = arith.mulf %175, %174 : vector<1x32xf32>
    %cst_67 = arith.constant 1.000000e+00 : f32
    %177 = vector.broadcast %cst_67 : f32 to vector<1x32xf32>
    %178 = arith.subf %176, %177 : vector<1x32xf32>
    %179 = vector.extract_strided_slice %171 {offsets = [0, 96], sizes = [1, 32], strides = [1, 1]} : vector<1x128xf32> to vector<1x32xf32>
    %180 = arith.mulf %173, %160 : vector<1x32xf32>
    %181 = arith.mulf %172, %178 : vector<1x32xf32>
    %182 = arith.addf %180, %181 : vector<1x32xf32>
    %183 = math.tanh %182 : vector<1x32xf32>
    %184 = arith.mulf %179, %183 : vector<1x32xf32>
    %185 = tpu.concatenate %30, %52, %74, %96, %118, %140, %162, %184 in 0 : vector<1x32xf32>, vector<1x32xf32>, vector<1x32xf32>, vector<1x32xf32>, vector<1x32xf32>, vector<1x32xf32>, vector<1x32xf32>, vector<1x32xf32> -> vector<8x32xf32>
    %c0_68 = arith.constant 0 : index
    %c0_69 = arith.constant 0 : index
    %186 = vector.load %arg6[%c0_68, %c0_69] : memref<32x128xf32, #tpu.memory_space<vmem>>, vector<32x128xf32>
    %cst_70 = arith.constant dense<0.000000e+00> : vector<8x128xf32>
    %187 = tpu.matmul %185, %186, %cst_70 {dimension_numbers = #tpu.dot_dimension_numbers<[1], [0], [0], [1], [0, 0, 1, 1], [], []>} : vector<8x32xf32>, vector<32x128xf32>, vector<8x128xf32> -> vector<8x128xf32>
    %c0_71 = arith.constant 0 : index
    %c0_72 = arith.constant 0 : index
    %188 = vector.load %arg7[%c0_71, %c0_72] : memref<1x128xf32, #tpu.memory_space<vmem>>, vector<1x128xf32>
    %189 = vector.broadcast %188 : vector<1x128xf32> to vector<8x128xf32>
    %190 = arith.addf %187, %189 : vector<8x128xf32>
    %191 = arith.negf %190 : vector<8x128xf32>
    %192 = math.exp %191 : vector<8x128xf32>
    %cst_73 = arith.constant 1.000000e+00 : f32
    %193 = vector.broadcast %cst_73 : f32 to vector<8x128xf32>
    %194 = arith.addf %193, %192 : vector<8x128xf32>
    %195 = arith.divf %193, %194 : vector<8x128xf32>
    %c0_74 = arith.constant 0 : index
    %c0_75 = arith.constant 0 : index
    %196 = vector.load %arg8[%c0_74, %c0_75] : memref<8x128xf32, #tpu.memory_space<vmem>>, vector<8x128xf32>
    tpu.vector_store %arg8[%c0_74, %c0_75], %195 {strides = array<i32>} : memref<8x128xf32, #tpu.memory_space<vmem>>, vector<8x128xf32>,
    %c0_76 = arith.constant 0 : index
    %c0_77 = arith.constant 0 : index
    %197 = vector.load %arg9[%c0_76, %c0_77] : memref<1x32xf32, #tpu.memory_space<vmem>>, vector<1x32xf32>
    tpu.vector_store %arg9[%c0_76, %c0_77], %184 {strides = array<i32>} : memref<1x32xf32, #tpu.memory_space<vmem>>, vector<1x32xf32>,
    %c0_78 = arith.constant 0 : index
    %c0_79 = arith.constant 0 : index
    %198 = vector.load %arg10[%c0_78, %c0_79] : memref<1x32xf32, #tpu.memory_space<vmem>>, vector<1x32xf32>
    tpu.vector_store %arg10[%c0_78, %c0_79], %182 {strides = array<i32>} : memref<1x32xf32, #tpu.memory_space<vmem>>, vector<1x32xf32>,
    return
  }
}

</mosaic_0001>

<llo_original>
// kernel: tpu_custom_call.1
$region0: #{tpu_custom_call.1}
  #allocation0 [shape = 'u32[]', space=smem, size = 0x4, offset = 0x4, fixed_abs, tag = 'smem constant byte address 0x4 - core index']
  #allocation1 [shape = 'u32[144,128]{1,0:T(1,128)}', space=vmem, size = 0x12000, scoped, tag = 'internal scratch']
  #allocation2 [shape = 'f32[8,128]{1,0:T(8,128)}', space=vmem, size = 0x1000, scoped, tag = 'scratch operand']
  %s0 = inlined_call_operand.hbm [shape: f32[8,32], index: 0, kind: input, shape index: {}]
  %s1 = inlined_call_operand.vmem [shape: f32[1,32], index: 1, kind: input, shape index: {}]
  %s2 = inlined_call_operand.vmem [shape: f32[1,32], index: 2, kind: input, shape index: {}]
  %s3 = inlined_call_operand.hbm [shape: f32[32,128], index: 3, kind: input, shape index: {}]
  %s4 = inlined_call_operand.hbm [shape: f32[32,128], index: 4, kind: input, shape index: {}]
  %s5 = inlined_call_operand.vmem [shape: f32[1,128], index: 5, kind: input, shape index: {}]
  %s6 = inlined_call_operand.hbm [shape: f32[32,128], index: 6, kind: input, shape index: {}]
  %s7 = inlined_call_operand.vmem [shape: f32[1,128], index: 7, kind: input, shape index: {}]
  %s8 = inlined_call_operand.hbm [shape: f32[8,128], index: 8, kind: output, shape index: {0}]
  %s9 = inlined_call_operand.hbm [shape: f32[1,32], index: 9, kind: output, shape index: {1}]
  %s10 = inlined_call_operand.hbm [shape: f32[1,32], index: 10, kind: output, shape index: {2}]
  %11 = xla_tuple %s8, %s9, %s10
  %s12 = sld [smem:[#allocation0]]
  $region74: #{tpu_custom_call.1} parent=0
    _
  %s14 = ssub.s32 1, %s12
  %s15 = scalar_select 0, %s14, %s12
  $region1: #{tpu_custom_call.1} parent=0
    #allocation3 [shape = 'u8[4096]{0}', space=vmem, size = 0x1000, scoped, tag = 'input window, operand 0, single buffered']
    #allocation4 [shape = 's32[1]{0}', space=sflag, size = 0x4, scoped, tag = 'scoped memory for tpu_custom_call.1']
    #allocation5 [shape = 's32[1]{0}', space=sflag, size = 0x4, scoped, tag = 'scoped memory for tpu_custom_call.1']
    #allocation6 [shape = 'u8[16384]{0}', space=vmem, size = 0x4000, scoped, tag = 'input window, operand 3, single buffered']
    #allocation7 [shape = 's32[1]{0}', space=sflag, size = 0x4, scoped, tag = 'scoped memory for tpu_custom_call.1']
    #allocation8 [shape = 'u8[16384]{0}', space=vmem, size = 0x4000, scoped, tag = 'input window, operand 4, single buffered']
    #allocation9 [shape = 'u8[16384]{0}', space=vmem, size = 0x4000, scoped, tag = 'input window, operand 6, single buffered']
    #allocation10 [shape = 's32[1]{0}', space=sflag, size = 0x4, scoped, tag = 'scoped memory for tpu_custom_call.1']
    #allocation11 [shape = 'u8[4096]{0}', space=vmem, size = 0x1000, scoped, tag = 'output window, operand 0, single buffered']
    #allocation12 [shape = 'u8[512]{0}', space=vmem, size = 0x400, scoped, tag = 'output window, operand 1, single buffered']
    #allocation13 [shape = 's32[1]{0}', space=sflag, size = 0x4, scoped, tag = 'scoped memory for tpu_custom_call.1']
    #allocation14 [shape = 'u8[512]{0}', space=vmem, size = 0x400, scoped, tag = 'output window, operand 2, single buffered']
    %16 = vsyncpa [#allocation4], 0
    %17 = vsyncpa [#allocation7], 0
    %18 = vsyncpa [#allocation10], 0
    %19 = vsyncpa [#allocation5], 0
    %20 = vsyncpa [#allocation13], 0
    // Predicated region
    $region2: #{tpu_custom_call.1} parent=1 // pred_check
      _
    $region3: #{tpu_custom_call.1} parent=1 // pred_check_branch
      %22 = sbr.rel (0) target = $region5
    $region4: #{tpu_custom_call.1} parent=1 // pred_region
      %s24 = ssub.s32 128, 128
      %25 = vsyncadd [#allocation4], %s24
      %s27 = sshll.u32 [#allocation3], 4
      %s28 = int_to_ptr.vmem [resolvable:$true] %s27
      %30 = dma.hbm_to_vmem [thread:$0]  %s0, 128, %s28, [#allocation4]
    $region5: #{tpu_custom_call.1} parent=1 // pred_fallthru
      _
    // Predicated region
    $region6: #{tpu_custom_call.1} parent=1 // pred_check
      _
    $region7: #{tpu_custom_call.1} parent=1 // pred_check_branch
      %32 = sbr.rel (0) target = $region9
    $region8: #{tpu_custom_call.1} parent=1 // pred_region
      _
    $region9: #{tpu_custom_call.1} parent=1 // pred_fallthru
      _
    // Predicated region
    $region10: #{tpu_custom_call.1} parent=1 // pred_check
      _
    $region11: #{tpu_custom_call.1} parent=1 // pred_check_branch
      %34 = sbr.rel (0) target = $region13
    $region12: #{tpu_custom_call.1} parent=1 // pred_region
      _
    $region13: #{tpu_custom_call.1} parent=1 // pred_fallthru
      _
    // Predicated region
    $region14: #{tpu_custom_call.1} parent=1 // pred_check
      _
    $region15: #{tpu_custom_call.1} parent=1 // pred_check_branch
      %36 = sbr.rel (0) target = $region17
    $region16: #{tpu_custom_call.1} parent=1 // pred_region
      %s38 = ssub.s32 512, 512
      %39 = vsyncadd [#allocation7], %s38
      %s40 = sshll.u32 [#allocation6], 4
      %s41 = int_to_ptr.vmem [resolvable:$true] %s40
      %46 = dma.hbm_to_vmem [thread:$0]  %s3, 512, %s41, [#allocation7], 128, 128, 8
    $region17: #{tpu_custom_call.1} parent=1 // pred_fallthru
      _
    // Predicated region
    $region18: #{tpu_custom_call.1} parent=1 // pred_check
      _
    $region19: #{tpu_custom_call.1} parent=1 // pred_check_branch
      %48 = sbr.rel (0) target = $region21
    $region20: #{tpu_custom_call.1} parent=1 // pred_region
      %s50 = ssub.s32 512, 512
      %51 = vsyncadd [#allocation7], %s50
      %s52 = sshll.u32 [#allocation8], 4
      %s53 = int_to_ptr.vmem [resolvable:$true] %s52
      %58 = dma.hbm_to_vmem [thread:$0]  %s4, 512, %s53, [#allocation7], 128, 128, 8
    $region21: #{tpu_custom_call.1} parent=1 // pred_fallthru
      _
    // Predicated region
    $region22: #{tpu_custom_call.1} parent=1 // pred_check
      _
    $region23: #{tpu_custom_call.1} parent=1 // pred_check_branch
      %60 = sbr.rel (0) target = $region25
    $region24: #{tpu_custom_call.1} parent=1 // pred_region
      _
    $region25: #{tpu_custom_call.1} parent=1 // pred_fallthru
      _
    // Predicated region
    $region26: #{tpu_custom_call.1} parent=1 // pred_check
      _
    $region27: #{tpu_custom_call.1} parent=1 // pred_check_branch
      %62 = sbr.rel (0) target = $region29
    $region28: #{tpu_custom_call.1} parent=1 // pred_region
      %s64 = ssub.s32 512, 512
      %65 = vsyncadd [#allocation10], %s64
      %s66 = sshll.u32 [#allocation9], 4
      %s67 = int_to_ptr.vmem [resolvable:$true] %s66
      %72 = dma.hbm_to_vmem [thread:$0]  %s6, 512, %s67, [#allocation10], 128, 128, 8
    $region29: #{tpu_custom_call.1} parent=1 // pred_fallthru
      _
    // Predicated region
    $region30: #{tpu_custom_call.1} parent=1 // pred_check
      _
    $region31: #{tpu_custom_call.1} parent=1 // pred_check_branch
      %74 = sbr.rel (0) target = $region33
    $region32: #{tpu_custom_call.1} parent=1 // pred_region
      _
    $region33: #{tpu_custom_call.1} parent=1 // pred_fallthru
      _
    // Predicated region
    $region34: #{tpu_custom_call.1} parent=1 // pred_check
      _
    $region35: #{tpu_custom_call.1} parent=1 // pred_check_branch
      %76 = sbr.rel (0) target = $region37
    $region36: #{tpu_custom_call.1} parent=1 // pred_region
      %77 = dma.done [#allocation4], 128
    $region37: #{tpu_custom_call.1} parent=1 // pred_fallthru
      _
    // Predicated region
    $region38: #{tpu_custom_call.1} parent=1 // pred_check
      _
    $region39: #{tpu_custom_call.1} parent=1 // pred_check_branch
      %79 = sbr.rel (0) target = $region41
    $region40: #{tpu_custom_call.1} parent=1 // pred_region
      %80 = dma.done [#allocation7], 512
    $region41: #{tpu_custom_call.1} parent=1 // pred_fallthru
      _
    // Predicated region
    $region42: #{tpu_custom_call.1} parent=1 // pred_check
      _
    $region43: #{tpu_custom_call.1} parent=1 // pred_check_branch
      %82 = sbr.rel (0) target = $region45
    $region44: #{tpu_custom_call.1} parent=1 // pred_region
      %83 = dma.done [#allocation7], 512
    $region45: #{tpu_custom_call.1} parent=1 // pred_fallthru
      _
    // Predicated region
    $region46: #{tpu_custom_call.1} parent=1 // pred_check
      _
    $region47: #{tpu_custom_call.1} parent=1 // pred_check_branch
      %85 = sbr.rel (0) target = $region49
    $region48: #{tpu_custom_call.1} parent=1 // pred_region
      %86 = dma.done [#allocation10], 512
    $region49: #{tpu_custom_call.1} parent=1 // pred_fallthru
      _
    %v87 = vld [vmem:[#allocation3] sm:$0xff]
    %v88 = vld [vmem:[#allocation6] sm:$0xff]
    %v89 = vld [vmem:[#allocation6 + $0x8] sm:$0xff]
    %v90 = vld [vmem:[#allocation6 + $0x10] sm:$0xff]
    %v91 = vld [vmem:[#allocation6 + $0x18] sm:$0xff]
    %v92 = vld [vmem:[%s5] sm:$0x1]
    %v94 = vlaneseq
    %v95 = vshrl.u32 %v94, 7
    %v96 = vsub.s32 0, %v95
    %v97 = vrot.slane %v92, %v96
    %vm99 = vcmask 261120
    %v101 = vsel %vm99, %v87, 0
    %103 = vmatprep.subr.mxu0 0.0
    %104 = vmatpush1.msra.mxu0 %v88
    %105 = vmatprep.subr.mxu0 0.0
    %106 = vmatpush1.msra.mxu0 %v89
    %107 = vmatprep.subr.mxu0 0.0
    %108 = vmatpush1.msra.mxu0 %v90
    %109 = vmatprep.subr.mxu0 0.0
    %110 = vmatpush1.msra.mxu0 %v91
    %111 = vmatprep.subr.mxu0 0.0
    %112 = vmatpush1.msra.mxu0 0.0
    %113 = vmatprep.subr.mxu0 0.0
    %114 = vmatpush1.msra.mxu0 0.0
    %115 = vmatprep.subr.mxu0 0.0
    %116 = vmatpush1.msra.mxu0 0.0
    %117 = vmatprep.subr.mxu0 0.0
    %118 = vmatpush1.msra.mxu0 0.0
    %119 = vmatprep.subr.mxu0 0.0
    %120 = vmatpush1.msra.mxu0 0.0
    %121 = vmatprep.subr.mxu0 0.0
    %122 = vmatpush1.msra.mxu0 0.0
    %123 = vmatprep.subr.mxu0 0.0
    %124 = vmatpush1.msra.mxu0 0.0
    %125 = vmatprep.subr.mxu0 0.0
    %126 = vmatpush1.msra.mxu0 0.0
    %127 = vmatprep.subr.mxu0 0.0
    %128 = vmatpush1.msra.mxu0 0.0
    %129 = vmatprep.subr.mxu0 0.0
    %130 = vmatpush1.msra.mxu0 0.0
    %131 = vmatprep.subr.mxu0 0.0
    %132 = vmatpush1.msra.mxu0 0.0
    %133 = vmatprep.subr.mxu0 0.0
    %134 = vmatpush1.msra.mxu0 0.0
    %135 = vmatprep.subr.mxu0 0.0
    %136 = vmatpush1.msra.mxu0 0.0
    %137 = vmatprep.subr.mxu0 0.0
    %138 = vmatpush1.msra.mxu0 0.0
    %139 = vmatprep.subr.mxu0 0.0
    %140 = vmatpush1.msra.mxu0 0.0
    %141 = vmatprep.subr.mxu0 0.0
    %142 = vmatpush1.msra.mxu0 0.0
    %143 = vmatprep.subr.mxu0 0.0
    %144 = vmatpush1.msra.mxu0 0.0
    %145 = vmatprep.subr.mxu0 0.0
    %146 = vmatpush1.msra.mxu0 0.0
    %147 = vmatprep.subr.mxu0 0.0
    %148 = vmatpush1.msra.mxu0 0.0
    %149 = vmatprep.subr.mxu0 0.0
    %150 = vmatpush1.msra.mxu0 0.0
    %151 = vmatprep.subr.mxu0 0.0
    %152 = vmatpush1.msra.mxu0 0.0
    %153 = vmatprep.subr.mxu0 0.0
    %154 = vmatpush1.msra.mxu0 0.0
    %155 = vmatprep.subr.mxu0 0.0
    %156 = vmatpush1.msra.mxu0 0.0
    %157 = vmatprep.subr.mxu0 0.0
    %158 = vmatpush1.msra.mxu0 0.0
    %159 = vmatprep.subr.mxu0 0.0
    %160 = vmatpush1.msra.mxu0 0.0
    %161 = vmatprep.subr.mxu0 0.0
    %162 = vmatpush1.msra.mxu0 0.0
    %163 = vmatprep.subr.mxu0 0.0
    %164 = vmatpush1.msra.mxu0 0.0
    %165 = vmatprep.subr.mxu0 0.0
    %166 = vmatpush1.msra.mxu0 0.0
    %167 = vmatprep.mubr.f32.mxu0 0.0
    %168 = vmatmul.mubr.f32.gmra.mrb[0].mxu0 %v101
    %v169 = vpop.f32.mrb[0].mxu0
    %v170 = vadd.f32 %v97, %v169
    %v171 = vpop.f32.mrb[0].mxu0
    %172 = vdwg.mxu0
    %173 = vst [vmem:[#allocation2] sm:$0xff] %v170
    %v174 = vld [vmem:[%s1] sm:$0x1]
    %v175 = vld [vmem:[%s2] sm:$0x1]
    %v176 = vld [vmem:[#allocation2] sm:$0x1]
    %v177 = vld [vmem:[#allocation8] sm:$0xff]
    %v178 = vld [vmem:[#allocation8 + $0x8] sm:$0xff]
    %v179 = vld [vmem:[#allocation8 + $0x10] sm:$0xff]
    %v180 = vld [vmem:[#allocation8 + $0x18] sm:$0xff]
    %v182 = vsel %vm99, %v174, 0
    %184 = vmatprep.subr.mxu0 0.0
    %185 = vmatpush1.msra.mxu0 %v177
    %186 = vmatprep.subr.mxu0 0.0
    %187 = vmatpush1.msra.mxu0 %v178
    %188 = vmatprep.subr.mxu0 0.0
    %189 = vmatpush1.msra.mxu0 %v179
    %190 = vmatprep.subr.mxu0 0.0
    %191 = vmatpush1.msra.mxu0 %v180
    %192 = vmatprep.subr.mxu0 0.0
    %193 = vmatpush1.msra.mxu0 0.0
    %194 = vmatprep.subr.mxu0 0.0
    %195 = vmatpush1.msra.mxu0 0.0
    %196 = vmatprep.subr.mxu0 0.0
    %197 = vmatpush1.msra.mxu0 0.0
    %198 = vmatprep.subr.mxu0 0.0
    %199 = vmatpush1.msra.mxu0 0.0
    %200 = vmatprep.subr.mxu0 0.0
    %201 = vmatpush1.msra.mxu0 0.0
    %202 = vmatprep.subr.mxu0 0.0
    %203 = vmatpush1.msra.mxu0 0.0
    %204 = vmatprep.subr.mxu0 0.0
    %205 = vmatpush1.msra.mxu0 0.0
    %206 = vmatprep.subr.mxu0 0.0
    %207 = vmatpush1.msra.mxu0 0.0
    %208 = vmatprep.subr.mxu0 0.0
    %209 = vmatpush1.msra.mxu0 0.0
    %210 = vmatprep.subr.mxu0 0.0
    %211 = vmatpush1.msra.mxu0 0.0
    %212 = vmatprep.subr.mxu0 0.0
    %213 = vmatpush1.msra.mxu0 0.0
    %214 = vmatprep.subr.mxu0 0.0
    %215 = vmatpush1.msra.mxu0 0.0
    %216 = vmatprep.subr.mxu0 0.0
    %217 = vmatpush1.msra.mxu0 0.0
    %218 = vmatprep.subr.mxu0 0.0
    %219 = vmatpush1.msra.mxu0 0.0
    %220 = vmatprep.subr.mxu0 0.0
    %221 = vmatpush1.msra.mxu0 0.0
    %222 = vmatprep.subr.mxu0 0.0
    %223 = vmatpush1.msra.mxu0 0.0
    %224 = vmatprep.subr.mxu0 0.0
    %225 = vmatpush1.msra.mxu0 0.0
    %226 = vmatprep.subr.mxu0 0.0
    %227 = vmatpush1.msra.mxu0 0.0
    %228 = vmatprep.subr.mxu0 0.0
    %229 = vmatpush1.msra.mxu0 0.0
    %230 = vmatprep.subr.mxu0 0.0
    %231 = vmatpush1.msra.mxu0 0.0
    %232 = vmatprep.subr.mxu0 0.0
    %233 = vmatpush1.msra.mxu0 0.0
    %234 = vmatprep.subr.mxu0 0.0
    %235 = vmatpush1.msra.mxu0 0.0
    %236 = vmatprep.subr.mxu0 0.0
    %237 = vmatpush1.msra.mxu0 0.0
    %238 = vmatprep.subr.mxu0 0.0
    %239 = vmatpush1.msra.mxu0 0.0
    %240 = vmatprep.subr.mxu0 0.0
    %241 = vmatpush1.msra.mxu0 0.0
    %242 = vmatprep.subr.mxu0 0.0
    %243 = vmatpush1.msra.mxu0 0.0
    %244 = vmatprep.subr.mxu0 0.0
    %245 = vmatpush1.msra.mxu0 0.0
    %246 = vmatprep.subr.mxu0 0.0
    %247 = vmatpush1.msra.mxu0 0.0
    %248 = vmatprep.mubr.f32.mxu0 0.0
    %249 = vmatmul.mubr.f32.gmra.mrb[0].mxu0 %v182
    %v250 = vpop.f32.mrb[0].mxu0
    %v251 = vadd.f32 0.0, %v250
    %v252 = vpop.f32.mrb[0].mxu0
    %253 = vdwg.mxu0
    %v254 = vadd.f32 %v176, %v251
    %v255 = vxor.u32 %v254, 2147483648
    %v256 = vmul.f32 %v255, 1.442695
    %v257 = vpow.pop %v256
    %v258 = vadd.f32 %v257, 1.0
    %v259 = vrcp.pop %v258
    %v260 = vmul.f32 1.0, %v259
    %v261 = vmul.f32 %v260, 2.0
    %v262 = vsub.f32 %v261, 1.0
    %v264 = vlaneseq
    %v265 = vshrl.u32 %v264, 7
    %v266 = vsub.s32 0, %v265
    %v267 = vrot.slane %v175, %v266
    %268 = vrot.lane.b32.xlu0 %v267, 32
    %v269 = vpop.permute.xlu0 %268
    %v271 = vmul.f32 %v260, %v269
    %273 = vrot.lane.b32.xlu0 %v262, 64
    %v274 = vpop.permute.xlu0 %273
    %v276 = vmul.f32 %v260, %v274
    %278 = vrot.lane.b32.xlu0 %v276, 32
    %v279 = vpop.permute.xlu0 %278
    %v281 = vadd.f32 %v271, %v279
    %v282 = vtanh.pop %v281
    %284 = vrot.lane.b32.xlu0 %v282, 64
    %v285 = vpop.permute.xlu0 %284
    %v287 = vmul.f32 %v260, %v285
    %v288 = vld [vmem:[#allocation2 + $0x1] sm:$0x1]
    %290 = vrot.lane.b32.xlu0 %v287, 32
    %v291 = vpop.permute.xlu0 %290
    %v292 = vsel %vm99, %v291, 0
    %294 = vmatprep.subr.mxu0 0.0
    %295 = vmatpush1.msra.mxu0 %v177
    %296 = vmatprep.subr.mxu0 0.0
    %297 = vmatpush1.msra.mxu0 %v178
    %298 = vmatprep.subr.mxu0 0.0
    %299 = vmatpush1.msra.mxu0 %v179
    %300 = vmatprep.subr.mxu0 0.0
    %301 = vmatpush1.msra.mxu0 %v180
    %302 = vmatprep.subr.mxu0 0.0
    %303 = vmatpush1.msra.mxu0 0.0
    %304 = vmatprep.subr.mxu0 0.0
    %305 = vmatpush1.msra.mxu0 0.0
    %306 = vmatprep.subr.mxu0 0.0
    %307 = vmatpush1.msra.mxu0 0.0
    %308 = vmatprep.subr.mxu0 0.0
    %309 = vmatpush1.msra.mxu0 0.0
    %310 = vmatprep.subr.mxu0 0.0
    %311 = vmatpush1.msra.mxu0 0.0
    %312 = vmatprep.subr.mxu0 0.0
    %313 = vmatpush1.msra.mxu0 0.0
    %314 = vmatprep.subr.mxu0 0.0
    %315 = vmatpush1.msra.mxu0 0.0
    %316 = vmatprep.subr.mxu0 0.0
    %317 = vmatpush1.msra.mxu0 0.0
    %318 = vmatprep.subr.mxu0 0.0
    %319 = vmatpush1.msra.mxu0 0.0
    %320 = vmatprep.subr.mxu0 0.0
    %321 = vmatpush1.msra.mxu0 0.0
    %322 = vmatprep.subr.mxu0 0.0
    %323 = vmatpush1.msra.mxu0 0.0
    %324 = vmatprep.subr.mxu0 0.0
    %325 = vmatpush1.msra.mxu0 0.0
    %326 = vmatprep.subr.mxu0 0.0
    %327 = vmatpush1.msra.mxu0 0.0
    %328 = vmatprep.subr.mxu0 0.0
    %329 = vmatpush1.msra.mxu0 0.0
    %330 = vmatprep.subr.mxu0 0.0
    %331 = vmatpush1.msra.mxu0 0.0
    %332 = vmatprep.subr.mxu0 0.0
    %333 = vmatpush1.msra.mxu0 0.0
    %334 = vmatprep.subr.mxu0 0.0
    %335 = vmatpush1.msra.mxu0 0.0
    %336 = vmatprep.subr.mxu0 0.0
    %337 = vmatpush1.msra.mxu0 0.0
    %338 = vmatprep.subr.mxu0 0.0
    %339 = vmatpush1.msra.mxu0 0.0
    %340 = vmatprep.subr.mxu0 0.0
    %341 = vmatpush1.msra.mxu0 0.0
    %342 = vmatprep.subr.mxu0 0.0
    %343 = vmatpush1.msra.mxu0 0.0
    %344 = vmatprep.subr.mxu0 0.0
    %345 = vmatpush1.msra.mxu0 0.0
    %346 = vmatprep.subr.mxu0 0.0
    %347 = vmatpush1.msra.mxu0 0.0
    %348 = vmatprep.subr.mxu0 0.0
    %349 = vmatpush1.msra.mxu0 0.0
    %350 = vmatprep.subr.mxu0 0.0
    %351 = vmatpush1.msra.mxu0 0.0
    %352 = vmatprep.subr.mxu0 0.0
    %353 = vmatpush1.msra.mxu0 0.0
    %354 = vmatprep.subr.mxu0 0.0
    %355 = vmatpush1.msra.mxu0 0.0
    %356 = vmatprep.subr.mxu0 0.0
    %357 = vmatpush1.msra.mxu0 0.0
    %358 = vmatprep.mubr.f32.mxu0 0.0
    %359 = vmatmul.mubr.f32.gmra.mrb[0].mxu0 %v292
    %v360 = vpop.f32.mrb[0].mxu0
    %v361 = vadd.f32 0.0, %v360
    %v362 = vpop.f32.mrb[0].mxu0
    %363 = vdwg.mxu0
    %v364 = vadd.f32 %v288, %v361
    %v365 = vxor.u32 %v364, 2147483648
    %v366 = vmul.f32 %v365, 1.442695
    %v367 = vpow.pop %v366
    %v368 = vadd.f32 %v367, 1.0
    %v369 = vrcp.pop %v368
    %v370 = vmul.f32 1.0, %v369
    %v371 = vmul.f32 %v370, 2.0
    %v372 = vsub.f32 %v371, 1.0
    %v373 = vmul.f32 %v370, %v281
    %375 = vrot.lane.b32.xlu0 %v372, 64
    %v376 = vpop.permute.xlu0 %375
    %v378 = vmul.f32 %v370, %v376
    %380 = vrot.lane.b32.xlu0 %v378, 32
    %v381 = vpop.permute.xlu0 %380
    %v383 = vadd.f32 %v373, %v381
    %v384 = vtanh.pop %v383
    %386 = vrot.lane.b32.xlu0 %v384, 64
    %v387 = vpop.permute.xlu0 %386
    %v389 = vmul.f32 %v370, %v387
    %v390 = vld [vmem:[#allocation2 + $0x2] sm:$0x1]
    %392 = vrot.lane.b32.xlu0 %v389, 32
    %v393 = vpop.permute.xlu0 %392
    %v394 = vsel %vm99, %v393, 0
    %396 = vmatprep.subr.mxu0 0.0
    %397 = vmatpush1.msra.mxu0 %v177
    %398 = vmatprep.subr.mxu0 0.0
    %399 = vmatpush1.msra.mxu0 %v178
    %400 = vmatprep.subr.mxu0 0.0
    %401 = vmatpush1.msra.mxu0 %v179
    %402 = vmatprep.subr.mxu0 0.0
    %403 = vmatpush1.msra.mxu0 %v180
    %404 = vmatprep.subr.mxu0 0.0
    %405 = vmatpush1.msra.mxu0 0.0
    %406 = vmatprep.subr.mxu0 0.0
    %407 = vmatpush1.msra.mxu0 0.0
    %408 = vmatprep.subr.mxu0 0.0
    %409 = vmatpush1.msra.mxu0 0.0
    %410 = vmatprep.subr.mxu0 0.0
    %411 = vmatpush1.msra.mxu0 0.0
    %412 = vmatprep.subr.mxu0 0.0
    %413 = vmatpush1.msra.mxu0 0.0
    %414 = vmatprep.subr.mxu0 0.0
    %415 = vmatpush1.msra.mxu0 0.0
    %416 = vmatprep.subr.mxu0 0.0
    %417 = vmatpush1.msra.mxu0 0.0
    %418 = vmatprep.subr.mxu0 0.0
    %419 = vmatpush1.msra.mxu0 0.0
    %420 = vmatprep.subr.mxu0 0.0
    %421 = vmatpush1.msra.mxu0 0.0
    %422 = vmatprep.subr.mxu0 0.0
    %423 = vmatpush1.msra.mxu0 0.0
    %424 = vmatprep.subr.mxu0 0.0
    %425 = vmatpush1.msra.mxu0 0.0
    %426 = vmatprep.subr.mxu0 0.0
    %427 = vmatpush1.msra.mxu0 0.0
    %428 = vmatprep.subr.mxu0 0.0
    %429 = vmatpush1.msra.mxu0 0.0
    %430 = vmatprep.subr.mxu0 0.0
    %431 = vmatpush1.msra.mxu0 0.0
    %432 = vmatprep.subr.mxu0 0.0
    %433 = vmatpush1.msra.mxu0 0.0
    %434 = vmatprep.subr.mxu0 0.0
    %435 = vmatpush1.msra.mxu0 0.0
    %436 = vmatprep.subr.mxu0 0.0
    %437 = vmatpush1.msra.mxu0 0.0
    %438 = vmatprep.subr.mxu0 0.0
    %439 = vmatpush1.msra.mxu0 0.0
    %440 = vmatprep.subr.mxu0 0.0
    %441 = vmatpush1.msra.mxu0 0.0
    %442 = vmatprep.subr.mxu0 0.0
    %443 = vmatpush1.msra.mxu0 0.0
    %444 = vmatprep.subr.mxu0 0.0
    %445 = vmatpush1.msra.mxu0 0.0
    %446 = vmatprep.subr.mxu0 0.0
    %447 = vmatpush1.msra.mxu0 0.0
    %448 = vmatprep.subr.mxu0 0.0
    %449 = vmatpush1.msra.mxu0 0.0
    %450 = vmatprep.subr.mxu0 0.0
    %451 = vmatpush1.msra.mxu0 0.0
    %452 = vmatprep.subr.mxu0 0.0
    %453 = vmatpush1.msra.mxu0 0.0
    %454 = vmatprep.subr.mxu0 0.0
    %455 = vmatpush1.msra.mxu0 0.0
    %456 = vmatprep.subr.mxu0 0.0
    %457 = vmatpush1.msra.mxu0 0.0
    %458 = vmatprep.subr.mxu0 0.0
    %459 = vmatpush1.msra.mxu0 0.0
    %460 = vmatprep.mubr.f32.mxu0 0.0
    %461 = vmatmul.mubr.f32.gmra.mrb[0].mxu0 %v394
    %v462 = vpop.f32.mrb[0].mxu0
    %v463 = vadd.f32 0.0, %v462
    %v464 = vpop.f32.mrb[0].mxu0
    %465 = vdwg.mxu0
    %v466 = vadd.f32 %v390, %v463
    %v467 = vxor.u32 %v466, 2147483648
    %v468 = vmul.f32 %v467, 1.442695
    %v469 = vpow.pop %v468
    %v470 = vadd.f32 %v469, 1.0
    %v471 = vrcp.pop %v470
    %v472 = vmul.f32 1.0, %v471
    %v473 = vmul.f32 %v472, 2.0
    %v474 = vsub.f32 %v473, 1.0
    %v475 = vmul.f32 %v472, %v383
    %477 = vrot.lane.b32.xlu0 %v474, 64
    %v478 = vpop.permute.xlu0 %477
    %v480 = vmul.f32 %v472, %v478
    %482 = vrot.lane.b32.xlu0 %v480, 32
    %v483 = vpop.permute.xlu0 %482
    %v485 = vadd.f32 %v475, %v483
    %v486 = vtanh.pop %v485
    %488 = vrot.lane.b32.xlu0 %v486, 64
    %v489 = vpop.permute.xlu0 %488
    %v491 = vmul.f32 %v472, %v489
    %v492 = vld [vmem:[#allocation2 + $0x3] sm:$0x1]
    %494 = vrot.lane.b32.xlu0 %v491, 32
    %v495 = vpop.permute.xlu0 %494
    %v496 = vsel %vm99, %v495, 0
    %498 = vmatprep.subr.mxu0 0.0
    %499 = vmatpush1.msra.mxu0 %v177
    %500 = vmatprep.subr.mxu0 0.0
    %501 = vmatpush1.msra.mxu0 %v178
    %502 = vmatprep.subr.mxu0 0.0
    %503 = vmatpush1.msra.mxu0 %v179
    %504 = vmatprep.subr.mxu0 0.0
    %505 = vmatpush1.msra.mxu0 %v180
    %506 = vmatprep.subr.mxu0 0.0
    %507 = vmatpush1.msra.mxu0 0.0
    %508 = vmatprep.subr.mxu0 0.0
    %509 = vmatpush1.msra.mxu0 0.0
    %510 = vmatprep.subr.mxu0 0.0
    %511 = vmatpush1.msra.mxu0 0.0
    %512 = vmatprep.subr.mxu0 0.0
    %513 = vmatpush1.msra.mxu0 0.0
    %514 = vmatprep.subr.mxu0 0.0
    %515 = vmatpush1.msra.mxu0 0.0
    %516 = vmatprep.subr.mxu0 0.0
    %517 = vmatpush1.msra.mxu0 0.0
    %518 = vmatprep.subr.mxu0 0.0
    %519 = vmatpush1.msra.mxu0 0.0
    %520 = vmatprep.subr.mxu0 0.0
    %521 = vmatpush1.msra.mxu0 0.0
    %522 = vmatprep.subr.mxu0 0.0
    %523 = vmatpush1.msra.mxu0 0.0
    %524 = vmatprep.subr.mxu0 0.0
    %525 = vmatpush1.msra.mxu0 0.0
    %526 = vmatprep.subr.mxu0 0.0
    %527 = vmatpush1.msra.mxu0 0.0
    %528 = vmatprep.subr.mxu0 0.0
    %529 = vmatpush1.msra.mxu0 0.0
    %530 = vmatprep.subr.mxu0 0.0
    %531 = vmatpush1.msra.mxu0 0.0
    %532 = vmatprep.subr.mxu0 0.0
    %533 = vmatpush1.msra.mxu0 0.0
    %534 = vmatprep.subr.mxu0 0.0
    %535 = vmatpush1.msra.mxu0 0.0
    %536 = vmatprep.subr.mxu0 0.0
    %537 = vmatpush1.msra.mxu0 0.0
    %538 = vmatprep.subr.mxu0 0.0
    %539 = vmatpush1.msra.mxu0 0.0
    %540 = vmatprep.subr.mxu0 0.0
    %541 = vmatpush1.msra.mxu0 0.0
    %542 = vmatprep.subr.mxu0 0.0
    %543 = vmatpush1.msra.mxu0 0.0
    %544 = vmatprep.subr.mxu0 0.0
    %545 = vmatpush1.msra.mxu0 0.0
    %546 = vmatprep.subr.mxu0 0.0
    %547 = vmatpush1.msra.mxu0 0.0
    %548 = vmatprep.subr.mxu0 0.0
    %549 = vmatpush1.msra.mxu0 0.0
    %550 = vmatprep.subr.mxu0 0.0
    %551 = vmatpush1.msra.mxu0 0.0
    %552 = vmatprep.subr.mxu0 0.0
    %553 = vmatpush1.msra.mxu0 0.0
    %554 = vmatprep.subr.mxu0 0.0
    %555 = vmatpush1.msra.mxu0 0.0
    %556 = vmatprep.subr.mxu0 0.0
    %557 = vmatpush1.msra.mxu0 0.0
    %558 = vmatprep.subr.mxu0 0.0
    %559 = vmatpush1.msra.mxu0 0.0
    %560 = vmatprep.subr.mxu0 0.0
    %561 = vmatpush1.msra.mxu0 0.0
    %562 = vmatprep.mubr.f32.mxu0 0.0
    %563 = vmatmul.mubr.f32.gmra.mrb[0].mxu0 %v496
    %v564 = vpop.f32.mrb[0].mxu0
    %v565 = vadd.f32 0.0, %v564
    %v566 = vpop.f32.mrb[0].mxu0
    %567 = vdwg.mxu0
    %v568 = vadd.f32 %v492, %v565
    %v569 = vxor.u32 %v568, 2147483648
    %v570 = vmul.f32 %v569, 1.442695
    %v571 = vpow.pop %v570
    %v572 = vadd.f32 %v571, 1.0
    %v573 = vrcp.pop %v572
    %v574 = vmul.f32 1.0, %v573
    %v575 = vmul.f32 %v574, 2.0
    %v576 = vsub.f32 %v575, 1.0
    %v577 = vmul.f32 %v574, %v485
    %579 = vrot.lane.b32.xlu0 %v576, 64
    %v580 = vpop.permute.xlu0 %579
    %v582 = vmul.f32 %v574, %v580
    %584 = vrot.lane.b32.xlu0 %v582, 32
    %v585 = vpop.permute.xlu0 %584
    %v587 = vadd.f32 %v577, %v585
    %v588 = vtanh.pop %v587
    %590 = vrot.lane.b32.xlu0 %v588, 64
    %v591 = vpop.permute.xlu0 %590
    %v593 = vmul.f32 %v574, %v591
    %v594 = vld [vmem:[#allocation2 + $0x4] sm:$0x1]
    %596 = vrot.lane.b32.xlu0 %v593, 32
    %v597 = vpop.permute.xlu0 %596
    %v598 = vsel %vm99, %v597, 0
    %600 = vmatprep.subr.mxu0 0.0
    %601 = vmatpush1.msra.mxu0 %v177
    %602 = vmatprep.subr.mxu0 0.0
    %603 = vmatpush1.msra.mxu0 %v178
    %604 = vmatprep.subr.mxu0 0.0
    %605 = vmatpush1.msra.mxu0 %v179
    %606 = vmatprep.subr.mxu0 0.0
    %607 = vmatpush1.msra.mxu0 %v180
    %608 = vmatprep.subr.mxu0 0.0
    %609 = vmatpush1.msra.mxu0 0.0
    %610 = vmatprep.subr.mxu0 0.0
    %611 = vmatpush1.msra.mxu0 0.0
    %612 = vmatprep.subr.mxu0 0.0
    %613 = vmatpush1.msra.mxu0 0.0
    %614 = vmatprep.subr.mxu0 0.0
    %615 = vmatpush1.msra.mxu0 0.0
    %616 = vmatprep.subr.mxu0 0.0
    %617 = vmatpush1.msra.mxu0 0.0
    %618 = vmatprep.subr.mxu0 0.0
    %619 = vmatpush1.msra.mxu0 0.0
    %620 = vmatprep.subr.mxu0 0.0
    %621 = vmatpush1.msra.mxu0 0.0
    %622 = vmatprep.subr.mxu0 0.0
    %623 = vmatpush1.msra.mxu0 0.0
    %624 = vmatprep.subr.mxu0 0.0
    %625 = vmatpush1.msra.mxu0 0.0
    %626 = vmatprep.subr.mxu0 0.0
    %627 = vmatpush1.msra.mxu0 0.0
    %628 = vmatprep.subr.mxu0 0.0
    %629 = vmatpush1.msra.mxu0 0.0
    %630 = vmatprep.subr.mxu0 0.0
    %631 = vmatpush1.msra.mxu0 0.0
    %632 = vmatprep.subr.mxu0 0.0
    %633 = vmatpush1.msra.mxu0 0.0
    %634 = vmatprep.subr.mxu0 0.0
    %635 = vmatpush1.msra.mxu0 0.0
    %636 = vmatprep.subr.mxu0 0.0
    %637 = vmatpush1.msra.mxu0 0.0
    %638 = vmatprep.subr.mxu0 0.0
    %639 = vmatpush1.msra.mxu0 0.0
    %640 = vmatprep.subr.mxu0 0.0
    %641 = vmatpush1.msra.mxu0 0.0
    %642 = vmatprep.subr.mxu0 0.0
    %643 = vmatpush1.msra.mxu0 0.0
    %644 = vmatprep.subr.mxu0 0.0
    %645 = vmatpush1.msra.mxu0 0.0
    %646 = vmatprep.subr.mxu0 0.0
    %647 = vmatpush1.msra.mxu0 0.0
    %648 = vmatprep.subr.mxu0 0.0
    %649 = vmatpush1.msra.mxu0 0.0
    %650 = vmatprep.subr.mxu0 0.0
    %651 = vmatpush1.msra.mxu0 0.0
    %652 = vmatprep.subr.mxu0 0.0
    %653 = vmatpush1.msra.mxu0 0.0
    %654 = vmatprep.subr.mxu0 0.0
    %655 = vmatpush1.msra.mxu0 0.0
    %656 = vmatprep.subr.mxu0 0.0
    %657 = vmatpush1.msra.mxu0 0.0
    %658 = vmatprep.subr.mxu0 0.0
    %659 = vmatpush1.msra.mxu0 0.0
    %660 = vmatprep.subr.mxu0 0.0
    %661 = vmatpush1.msra.mxu0 0.0
    %662 = vmatprep.subr.mxu0 0.0
    %663 = vmatpush1.msra.mxu0 0.0
    %664 = vmatprep.mubr.f32.mxu0 0.0
    %665 = vmatmul.mubr.f32.gmra.mrb[0].mxu0 %v598
    %v666 = vpop.f32.mrb[0].mxu0
    %v667 = vadd.f32 0.0, %v666
    %v668 = vpop.f32.mrb[0].mxu0
    %669 = vdwg.mxu0
    %v670 = vadd.f32 %v594, %v667
    %v671 = vxor.u32 %v670, 2147483648
    %v672 = vmul.f32 %v671, 1.442695
    %v673 = vpow.pop %v672
    %v674 = vadd.f32 %v673, 1.0
    %v675 = vrcp.pop %v674
    %v676 = vmul.f32 1.0, %v675
    %v677 = vmul.f32 %v676, 2.0
    %v678 = vsub.f32 %v677, 1.0
    %v679 = vmul.f32 %v676, %v587
    %681 = vrot.lane.b32.xlu0 %v678, 64
    %v682 = vpop.permute.xlu0 %681
    %v684 = vmul.f32 %v676, %v682
    %686 = vrot.lane.b32.xlu0 %v684, 32
    %v687 = vpop.permute.xlu0 %686
    %v689 = vadd.f32 %v679, %v687
    %v690 = vtanh.pop %v689
    %692 = vrot.lane.b32.xlu0 %v690, 64
    %v693 = vpop.permute.xlu0 %692
    %v695 = vmul.f32 %v676, %v693
    %v696 = vld [vmem:[#allocation2 + $0x5] sm:$0x1]
    %698 = vrot.lane.b32.xlu0 %v695, 32
    %v699 = vpop.permute.xlu0 %698
    %v700 = vsel %vm99, %v699, 0
    %702 = vmatprep.subr.mxu0 0.0
    %703 = vmatpush1.msra.mxu0 %v177
    %704 = vmatprep.subr.mxu0 0.0
    %705 = vmatpush1.msra.mxu0 %v178
    %706 = vmatprep.subr.mxu0 0.0
    %707 = vmatpush1.msra.mxu0 %v179
    %708 = vmatprep.subr.mxu0 0.0
    %709 = vmatpush1.msra.mxu0 %v180
    %710 = vmatprep.subr.mxu0 0.0
    %711 = vmatpush1.msra.mxu0 0.0
    %712 = vmatprep.subr.mxu0 0.0
    %713 = vmatpush1.msra.mxu0 0.0
    %714 = vmatprep.subr.mxu0 0.0
    %715 = vmatpush1.msra.mxu0 0.0
    %716 = vmatprep.subr.mxu0 0.0
    %717 = vmatpush1.msra.mxu0 0.0
    %718 = vmatprep.subr.mxu0 0.0
    %719 = vmatpush1.msra.mxu0 0.0
    %720 = vmatprep.subr.mxu0 0.0
    %721 = vmatpush1.msra.mxu0 0.0
    %722 = vmatprep.subr.mxu0 0.0
    %723 = vmatpush1.msra.mxu0 0.0
    %724 = vmatprep.subr.mxu0 0.0
    %725 = vmatpush1.msra.mxu0 0.0
    %726 = vmatprep.subr.mxu0 0.0
    %727 = vmatpush1.msra.mxu0 0.0
    %728 = vmatprep.subr.mxu0 0.0
    %729 = vmatpush1.msra.mxu0 0.0
    %730 = vmatprep.subr.mxu0 0.0
    %731 = vmatpush1.msra.mxu0 0.0
    %732 = vmatprep.subr.mxu0 0.0
    %733 = vmatpush1.msra.mxu0 0.0
    %734 = vmatprep.subr.mxu0 0.0
    %735 = vmatpush1.msra.mxu0 0.0
    %736 = vmatprep.subr.mxu0 0.0
    %737 = vmatpush1.msra.mxu0 0.0
    %738 = vmatprep.subr.mxu0 0.0
    %739 = vmatpush1.msra.mxu0 0.0
    %740 = vmatprep.subr.mxu0 0.0
    %741 = vmatpush1.msra.mxu0 0.0
    %742 = vmatprep.subr.mxu0 0.0
    %743 = vmatpush1.msra.mxu0 0.0
    %744 = vmatprep.subr.mxu0 0.0
    %745 = vmatpush1.msra.mxu0 0.0
    %746 = vmatprep.subr.mxu0 0.0
    %747 = vmatpush1.msra.mxu0 0.0
    %748 = vmatprep.subr.mxu0 0.0
    %749 = vmatpush1.msra.mxu0 0.0
    %750 = vmatprep.subr.mxu0 0.0
    %751 = vmatpush1.msra.mxu0 0.0
    %752 = vmatprep.subr.mxu0 0.0
    %753 = vmatpush1.msra.mxu0 0.0
    %754 = vmatprep.subr.mxu0 0.0
    %755 = vmatpush1.msra.mxu0 0.0
    %756 = vmatprep.subr.mxu0 0.0
    %757 = vmatpush1.msra.mxu0 0.0
    %758 = vmatprep.subr.mxu0 0.0
    %759 = vmatpush1.msra.mxu0 0.0
    %760 = vmatprep.subr.mxu0 0.0
    %761 = vmatpush1.msra.mxu0 0.0
    %762 = vmatprep.subr.mxu0 0.0
    %763 = vmatpush1.msra.mxu0 0.0
    %764 = vmatprep.subr.mxu0 0.0
    %765 = vmatpush1.msra.mxu0 0.0
    %766 = vmatprep.mubr.f32.mxu0 0.0
    %767 = vmatmul.mubr.f32.gmra.mrb[0].mxu0 %v700
    %v768 = vpop.f32.mrb[0].mxu0
    %v769 = vadd.f32 0.0, %v768
    %v770 = vpop.f32.mrb[0].mxu0
    %771 = vdwg.mxu0
    %v772 = vadd.f32 %v696, %v769
    %v773 = vxor.u32 %v772, 2147483648
    %v774 = vmul.f32 %v773, 1.442695
    %v775 = vpow.pop %v774
    %v776 = vadd.f32 %v775, 1.0
    %v777 = vrcp.pop %v776
    %v778 = vmul.f32 1.0, %v777
    %v779 = vmul.f32 %v778, 2.0
    %v780 = vsub.f32 %v779, 1.0
    %v781 = vmul.f32 %v778, %v689
    %783 = vrot.lane.b32.xlu0 %v780, 64
    %v784 = vpop.permute.xlu0 %783
    %v786 = vmul.f32 %v778, %v784
    %788 = vrot.lane.b32.xlu0 %v786, 32
    %v789 = vpop.permute.xlu0 %788
    %v791 = vadd.f32 %v781, %v789
    %v792 = vtanh.pop %v791
    %794 = vrot.lane.b32.xlu0 %v792, 64
    %v795 = vpop.permute.xlu0 %794
    %v797 = vmul.f32 %v778, %v795
    %v798 = vld [vmem:[#allocation2 + $0x6] sm:$0x1]
    %800 = vrot.lane.b32.xlu0 %v797, 32
    %v801 = vpop.permute.xlu0 %800
    %v802 = vsel %vm99, %v801, 0
    %804 = vmatprep.subr.mxu0 0.0
    %805 = vmatpush1.msra.mxu0 %v177
    %806 = vmatprep.subr.mxu0 0.0
    %807 = vmatpush1.msra.mxu0 %v178
    %808 = vmatprep.subr.mxu0 0.0
    %809 = vmatpush1.msra.mxu0 %v179
    %810 = vmatprep.subr.mxu0 0.0
    %811 = vmatpush1.msra.mxu0 %v180
    %812 = vmatprep.subr.mxu0 0.0
    %813 = vmatpush1.msra.mxu0 0.0
    %814 = vmatprep.subr.mxu0 0.0
    %815 = vmatpush1.msra.mxu0 0.0
    %816 = vmatprep.subr.mxu0 0.0
    %817 = vmatpush1.msra.mxu0 0.0
    %818 = vmatprep.subr.mxu0 0.0
    %819 = vmatpush1.msra.mxu0 0.0
    %820 = vmatprep.subr.mxu0 0.0
    %821 = vmatpush1.msra.mxu0 0.0
    %822 = vmatprep.subr.mxu0 0.0
    %823 = vmatpush1.msra.mxu0 0.0
    %824 = vmatprep.subr.mxu0 0.0
    %825 = vmatpush1.msra.mxu0 0.0
    %826 = vmatprep.subr.mxu0 0.0
    %827 = vmatpush1.msra.mxu0 0.0
    %828 = vmatprep.subr.mxu0 0.0
    %829 = vmatpush1.msra.mxu0 0.0
    %830 = vmatprep.subr.mxu0 0.0
    %831 = vmatpush1.msra.mxu0 0.0
    %832 = vmatprep.subr.mxu0 0.0
    %833 = vmatpush1.msra.mxu0 0.0
    %834 = vmatprep.subr.mxu0 0.0
    %835 = vmatpush1.msra.mxu0 0.0
    %836 = vmatprep.subr.mxu0 0.0
    %837 = vmatpush1.msra.mxu0 0.0
    %838 = vmatprep.subr.mxu0 0.0
    %839 = vmatpush1.msra.mxu0 0.0
    %840 = vmatprep.subr.mxu0 0.0
    %841 = vmatpush1.msra.mxu0 0.0
    %842 = vmatprep.subr.mxu0 0.0
    %843 = vmatpush1.msra.mxu0 0.0
    %844 = vmatprep.subr.mxu0 0.0
    %845 = vmatpush1.msra.mxu0 0.0
    %846 = vmatprep.subr.mxu0 0.0
    %847 = vmatpush1.msra.mxu0 0.0
    %848 = vmatprep.subr.mxu0 0.0
    %849 = vmatpush1.msra.mxu0 0.0
    %850 = vmatprep.subr.mxu0 0.0
    %851 = vmatpush1.msra.mxu0 0.0
    %852 = vmatprep.subr.mxu0 0.0
    %853 = vmatpush1.msra.mxu0 0.0
    %854 = vmatprep.subr.mxu0 0.0
    %855 = vmatpush1.msra.mxu0 0.0
    %856 = vmatprep.subr.mxu0 0.0
    %857 = vmatpush1.msra.mxu0 0.0
    %858 = vmatprep.subr.mxu0 0.0
    %859 = vmatpush1.msra.mxu0 0.0
    %860 = vmatprep.subr.mxu0 0.0
    %861 = vmatpush1.msra.mxu0 0.0
    %862 = vmatprep.subr.mxu0 0.0
    %863 = vmatpush1.msra.mxu0 0.0
    %864 = vmatprep.subr.mxu0 0.0
    %865 = vmatpush1.msra.mxu0 0.0
    %866 = vmatprep.subr.mxu0 0.0
    %867 = vmatpush1.msra.mxu0 0.0
    %868 = vmatprep.mubr.f32.mxu0 0.0
    %869 = vmatmul.mubr.f32.gmra.mrb[0].mxu0 %v802
    %v870 = vpop.f32.mrb[0].mxu0
    %v871 = vadd.f32 0.0, %v870
    %v872 = vpop.f32.mrb[0].mxu0
    %873 = vdwg.mxu0
    %v874 = vadd.f32 %v798, %v871
    %v875 = vxor.u32 %v874, 2147483648
    %v876 = vmul.f32 %v875, 1.442695
    %v877 = vpow.pop %v876
    %v878 = vadd.f32 %v877, 1.0
    %v879 = vrcp.pop %v878
    %v880 = vmul.f32 1.0, %v879
    %v881 = vmul.f32 %v880, 2.0
    %v882 = vsub.f32 %v881, 1.0
    %v883 = vmul.f32 %v880, %v791
    %885 = vrot.lane.b32.xlu0 %v882, 64
    %v886 = vpop.permute.xlu0 %885
    %v888 = vmul.f32 %v880, %v886
    %890 = vrot.lane.b32.xlu0 %v888, 32
    %v891 = vpop.permute.xlu0 %890
    %v893 = vadd.f32 %v883, %v891
    %v894 = vtanh.pop %v893
    %896 = vrot.lane.b32.xlu0 %v894, 64
    %v897 = vpop.permute.xlu0 %896
    %v899 = vmul.f32 %v880, %v897
    %v900 = vld [vmem:[#allocation2 + $0x7] sm:$0x1]
    %902 = vrot.lane.b32.xlu0 %v899, 32
    %v903 = vpop.permute.xlu0 %902
    %v904 = vsel %vm99, %v903, 0
    %906 = vmatprep.subr.mxu0 0.0
    %907 = vmatpush1.msra.mxu0 %v177
    %908 = vmatprep.subr.mxu0 0.0
    %909 = vmatpush1.msra.mxu0 %v178
    %910 = vmatprep.subr.mxu0 0.0
    %911 = vmatpush1.msra.mxu0 %v179
    %912 = vmatprep.subr.mxu0 0.0
    %913 = vmatpush1.msra.mxu0 %v180
    %914 = vmatprep.subr.mxu0 0.0
    %915 = vmatpush1.msra.mxu0 0.0
    %916 = vmatprep.subr.mxu0 0.0
    %917 = vmatpush1.msra.mxu0 0.0
    %918 = vmatprep.subr.mxu0 0.0
    %919 = vmatpush1.msra.mxu0 0.0
    %920 = vmatprep.subr.mxu0 0.0
    %921 = vmatpush1.msra.mxu0 0.0
    %922 = vmatprep.subr.mxu0 0.0
    %923 = vmatpush1.msra.mxu0 0.0
    %924 = vmatprep.subr.mxu0 0.0
    %925 = vmatpush1.msra.mxu0 0.0
    %926 = vmatprep.subr.mxu0 0.0
    %927 = vmatpush1.msra.mxu0 0.0
    %928 = vmatprep.subr.mxu0 0.0
    %929 = vmatpush1.msra.mxu0 0.0
    %930 = vmatprep.subr.mxu0 0.0
    %931 = vmatpush1.msra.mxu0 0.0
    %932 = vmatprep.subr.mxu0 0.0
    %933 = vmatpush1.msra.mxu0 0.0
    %934 = vmatprep.subr.mxu0 0.0
    %935 = vmatpush1.msra.mxu0 0.0
    %936 = vmatprep.subr.mxu0 0.0
    %937 = vmatpush1.msra.mxu0 0.0
    %938 = vmatprep.subr.mxu0 0.0
    %939 = vmatpush1.msra.mxu0 0.0
    %940 = vmatprep.subr.mxu0 0.0
    %941 = vmatpush1.msra.mxu0 0.0
    %942 = vmatprep.subr.mxu0 0.0
    %943 = vmatpush1.msra.mxu0 0.0
    %944 = vmatprep.subr.mxu0 0.0
    %945 = vmatpush1.msra.mxu0 0.0
    %946 = vmatprep.subr.mxu0 0.0
    %947 = vmatpush1.msra.mxu0 0.0
    %948 = vmatprep.subr.mxu0 0.0
    %949 = vmatpush1.msra.mxu0 0.0
    %950 = vmatprep.subr.mxu0 0.0
    %951 = vmatpush1.msra.mxu0 0.0
    %952 = vmatprep.subr.mxu0 0.0
    %953 = vmatpush1.msra.mxu0 0.0
    %954 = vmatprep.subr.mxu0 0.0
    %955 = vmatpush1.msra.mxu0 0.0
    %956 = vmatprep.subr.mxu0 0.0
    %957 = vmatpush1.msra.mxu0 0.0
    %958 = vmatprep.subr.mxu0 0.0
    %959 = vmatpush1.msra.mxu0 0.0
    %960 = vmatprep.subr.mxu0 0.0
    %961 = vmatpush1.msra.mxu0 0.0
    %962 = vmatprep.subr.mxu0 0.0
    %963 = vmatpush1.msra.mxu0 0.0
    %964 = vmatprep.subr.mxu0 0.0
    %965 = vmatpush1.msra.mxu0 0.0
    %966 = vmatprep.subr.mxu0 0.0
    %967 = vmatpush1.msra.mxu0 0.0
    %968 = vmatprep.subr.mxu0 0.0
    %969 = vmatpush1.msra.mxu0 0.0
    %970 = vmatprep.mubr.f32.mxu0 0.0
    %971 = vmatmul.mubr.f32.gmra.mrb[0].mxu0 %v904
    %v972 = vpop.f32.mrb[0].mxu0
    %v973 = vadd.f32 0.0, %v972
    %v974 = vpop.f32.mrb[0].mxu0
    %975 = vdwg.mxu0
    %v976 = vadd.f32 %v900, %v973
    %v977 = vxor.u32 %v976, 2147483648
    %v978 = vmul.f32 %v977, 1.442695
    %v979 = vpow.pop %v978
    %v980 = vadd.f32 %v979, 1.0
    %v981 = vrcp.pop %v980
    %v982 = vmul.f32 1.0, %v981
    %v983 = vmul.f32 %v982, 2.0
    %v984 = vsub.f32 %v983, 1.0
    %v985 = vmul.f32 %v982, %v893
    %987 = vrot.lane.b32.xlu0 %v984, 64
    %v988 = vpop.permute.xlu0 %987
    %v990 = vmul.f32 %v982, %v988
    %992 = vrot.lane.b32.xlu0 %v990, 32
    %v993 = vpop.permute.xlu0 %992
    %v995 = vadd.f32 %v985, %v993
    %v996 = vtanh.pop %v995
    %998 = vrot.lane.b32.xlu0 %v996, 64
    %v999 = vpop.permute.xlu0 %998
    %v1001 = vmul.f32 %v982, %v999
    %v1002 = vrot.slane %v389, 7
    %v1004 = vrot.slane %v491, 6
    %v1006 = vrot.slane %v593, 5
    %v1008 = vrot.slane %v695, 4
    %v1010 = vrot.slane %v797, 3
    %v1012 = vrot.slane %v899, 2
    %v1015 = vrot.slane %v1001, 1
    %vm1017 = vcmask 1040384
    %v1018 = vsel %vm1017, %v287, %v1002
    %vm1019 = vcmask 1041408
    %v1020 = vsel %vm1019, %v1018, %v1004
    %vm1021 = vcmask 1042432
    %v1022 = vsel %vm1021, %v1020, %v1006
    %vm1023 = vcmask 1043456
    %v1024 = vsel %vm1023, %v1022, %v1008
    %vm1025 = vcmask 1044480
    %v1026 = vsel %vm1025, %v1024, %v1010
    %vm1027 = vcmask 1045504
    %v1028 = vsel %vm1027, %v1026, %v1012
    %vm1029 = vcmask 1046528
    %v1030 = vsel %vm1029, %v1028, %v1015
    %v1031 = vld [vmem:[#allocation9] sm:$0xff]
    %v1032 = vld [vmem:[#allocation9 + $0x8] sm:$0xff]
    %v1033 = vld [vmem:[#allocation9 + $0x10] sm:$0xff]
    %v1034 = vld [vmem:[#allocation9 + $0x18] sm:$0xff]
    %v1035 = vld [vmem:[%s7] sm:$0x1]
    %v1037 = vlaneseq
    %v1038 = vshrl.u32 %v1037, 7
    %v1039 = vsub.s32 0, %v1038
    %v1040 = vrot.slane %v1035, %v1039
    %1043 = vrot.lane.b32.xlu0 %v1030, 32
    %v1044 = vpop.permute.xlu0 %1043
    %v1045 = vsel %vm99, %v1044, 0
    %1047 = vmatprep.subr.mxu0 0.0
    %1048 = vmatpush1.msra.mxu0 %v1031
    %1049 = vmatprep.subr.mxu0 0.0
    %1050 = vmatpush1.msra.mxu0 %v1032
    %1051 = vmatprep.subr.mxu0 0.0
    %1052 = vmatpush1.msra.mxu0 %v1033
    %1053 = vmatprep.subr.mxu0 0.0
    %1054 = vmatpush1.msra.mxu0 %v1034
    %1055 = vmatprep.subr.mxu0 0.0
    %1056 = vmatpush1.msra.mxu0 0.0
    %1057 = vmatprep.subr.mxu0 0.0
    %1058 = vmatpush1.msra.mxu0 0.0
    %1059 = vmatprep.subr.mxu0 0.0
    %1060 = vmatpush1.msra.mxu0 0.0
    %1061 = vmatprep.subr.mxu0 0.0
    %1062 = vmatpush1.msra.mxu0 0.0
    %1063 = vmatprep.subr.mxu0 0.0
    %1064 = vmatpush1.msra.mxu0 0.0
    %1065 = vmatprep.subr.mxu0 0.0
    %1066 = vmatpush1.msra.mxu0 0.0
    %1067 = vmatprep.subr.mxu0 0.0
    %1068 = vmatpush1.msra.mxu0 0.0
    %1069 = vmatprep.subr.mxu0 0.0
    %1070 = vmatpush1.msra.mxu0 0.0
    %1071 = vmatprep.subr.mxu0 0.0
    %1072 = vmatpush1.msra.mxu0 0.0
    %1073 = vmatprep.subr.mxu0 0.0
    %1074 = vmatpush1.msra.mxu0 0.0
    %1075 = vmatprep.subr.mxu0 0.0
    %1076 = vmatpush1.msra.mxu0 0.0
    %1077 = vmatprep.subr.mxu0 0.0
    %1078 = vmatpush1.msra.mxu0 0.0
    %1079 = vmatprep.subr.mxu0 0.0
    %1080 = vmatpush1.msra.mxu0 0.0
    %1081 = vmatprep.subr.mxu0 0.0
    %1082 = vmatpush1.msra.mxu0 0.0
    %1083 = vmatprep.subr.mxu0 0.0
    %1084 = vmatpush1.msra.mxu0 0.0
    %1085 = vmatprep.subr.mxu0 0.0
    %1086 = vmatpush1.msra.mxu0 0.0
    %1087 = vmatprep.subr.mxu0 0.0
    %1088 = vmatpush1.msra.mxu0 0.0
    %1089 = vmatprep.subr.mxu0 0.0
    %1090 = vmatpush1.msra.mxu0 0.0
    %1091 = vmatprep.subr.mxu0 0.0
    %1092 = vmatpush1.msra.mxu0 0.0
    %1093 = vmatprep.subr.mxu0 0.0
    %1094 = vmatpush1.msra.mxu0 0.0
    %1095 = vmatprep.subr.mxu0 0.0
    %1096 = vmatpush1.msra.mxu0 0.0
    %1097 = vmatprep.subr.mxu0 0.0
    %1098 = vmatpush1.msra.mxu0 0.0
    %1099 = vmatprep.subr.mxu0 0.0
    %1100 = vmatpush1.msra.mxu0 0.0
    %1101 = vmatprep.subr.mxu0 0.0
    %1102 = vmatpush1.msra.mxu0 0.0
    %1103 = vmatprep.subr.mxu0 0.0
    %1104 = vmatpush1.msra.mxu0 0.0
    %1105 = vmatprep.subr.mxu0 0.0
    %1106 = vmatpush1.msra.mxu0 0.0
    %1107 = vmatprep.subr.mxu0 0.0
    %1108 = vmatpush1.msra.mxu0 0.0
    %1109 = vmatprep.subr.mxu0 0.0
    %1110 = vmatpush1.msra.mxu0 0.0
    %1111 = vmatprep.mubr.f32.mxu0 0.0
    %1112 = vmatmul.mubr.f32.gmra.mrb[0].mxu0 %v1045
    %v1113 = vpop.f32.mrb[0].mxu0
    %v1114 = vadd.f32 %v1040, %v1113
    %v1115 = vpop.f32.mrb[0].mxu0
    %1116 = vdwg.mxu0
    %v1117 = vxor.u32 %v1114, 2147483648
    %v1118 = vmul.f32 %v1117, 1.442695
    %v1119 = vpow.pop %v1118
    %v1120 = vadd.f32 %v1119, 1.0
    %v1121 = vrcp.pop %v1120
    %v1122 = vmul.f32 1.0, %v1121
    %1123 = vst [vmem:[#allocation11] sm:$0xff] %v1122
    %1124 = vrot.lane.b32.xlu0 %v1001, 32
    %v1125 = vpop.permute.xlu0 %1124
    %vm1127 = vcmask 253952
    %1128 = vst.msk [vmem:[#allocation12] sm:$0x1] %vm1127, %v1125
    %1130 = vrot.lane.b32.xlu0 %v995, 96
    %v1131 = vpop.permute.xlu0 %1130
    %1133 = vst.msk [vmem:[#allocation14] sm:$0x1] %vm1127, %v1131
    // Predicated region
    $region50: #{tpu_custom_call.1} parent=1 // pred_check
      _
    $region51: #{tpu_custom_call.1} parent=1 // pred_check_branch
      %1135 = sbr.rel (0) target = $region53
    $region52: #{tpu_custom_call.1} parent=1 // pred_region
      %s1137 = ssub.s32 128, 128
      %1138 = vsyncadd [#allocation5], %s1137
      %s1140 = sshll.u32 [#allocation11], 4
      %s1141 = int_to_ptr.vmem [resolvable:$true] %s1140
      %1143 = dma.vmem_to_hbm [thread:$0]  %s1141, 128, %s8, [#allocation5]
    $region53: #{tpu_custom_call.1} parent=1 // pred_fallthru
      _
    // Predicated region
    $region54: #{tpu_custom_call.1} parent=1 // pred_check
      _
    $region55: #{tpu_custom_call.1} parent=1 // pred_check_branch
      %1145 = sbr.rel (0) target = $region57
    $region56: #{tpu_custom_call.1} parent=1 // pred_region
      %s1147 = ssub.s32 16, 16
      %1148 = vsyncadd [#allocation13], %s1147
      %s1150 = sshll.u32 [#allocation12], 4
      %s1151 = int_to_ptr.vmem [resolvable:$true] %s1150
      %1153 = dma.vmem_to_hbm [thread:$0]  %s1151, 16, %s9, [#allocation13]
    $region57: #{tpu_custom_call.1} parent=1 // pred_fallthru
      _
    // Predicated region
    $region58: #{tpu_custom_call.1} parent=1 // pred_check
      _
    $region59: #{tpu_custom_call.1} parent=1 // pred_check_branch
      %1155 = sbr.rel (0) target = $region61
    $region60: #{tpu_custom_call.1} parent=1 // pred_region
      %s1157 = ssub.s32 16, 16
      %1158 = vsyncadd [#allocation13], %s1157
      %s1160 = sshll.u32 [#allocation14], 4
      %s1161 = int_to_ptr.vmem [resolvable:$true] %s1160
      %1163 = dma.vmem_to_hbm [thread:$0]  %s1161, 16, %s10, [#allocation13]
    $region61: #{tpu_custom_call.1} parent=1 // pred_fallthru
      _
    // Predicated region
    $region62: #{tpu_custom_call.1} parent=1 // pred_check
      _
    $region63: #{tpu_custom_call.1} parent=1 // pred_check_branch
      %1165 = sbr.rel (0) target = $region65
    $region64: #{tpu_custom_call.1} parent=1 // pred_region
      %1166 = dma.done [#allocation5], 128
    $region65: #{tpu_custom_call.1} parent=1 // pred_fallthru
      _
    // Predicated region
    $region66: #{tpu_custom_call.1} parent=1 // pred_check
      _
    $region67: #{tpu_custom_call.1} parent=1 // pred_check_branch
      %1168 = sbr.rel (0) target = $region69
    $region68: #{tpu_custom_call.1} parent=1 // pred_region
      %1169 = dma.done [#allocation13], 16
    $region69: #{tpu_custom_call.1} parent=1 // pred_fallthru
      _
    // Predicated region
    $region70: #{tpu_custom_call.1} parent=1 // pred_check
      _
    $region71: #{tpu_custom_call.1} parent=1 // pred_check_branch
      %1171 = sbr.rel (0) target = $region73
    $region72: #{tpu_custom_call.1} parent=1 // pred_region
      %1172 = dma.done [#allocation13], 16
    $region73: #{tpu_custom_call.1} parent=1 // pred_fallthru
      _
    %1173 = vsyncpa [#allocation4], 1
    %1174 = vsyncpa [#allocation7], 1
    %1175 = vsyncpa [#allocation10], 1
    %1176 = vsyncpa [#allocation5], 1
    %1177 = vsyncpa [#allocation13], 1

</llo_original>
